<compile_context>
chip_gen: v7x
topology: tpu7x:2x2x1
jax: 0.10.0
libtpu: 0.0.40
codegen_flags: <defaults>
</compile_context>

<pallas_src>
import jax
import jax.numpy as jnp
from jax.experimental import pallas as pl
from jax.experimental.pallas import tpu as pltpu

BN_EPS = 1e-5

_COMPILER_PARAMS = pltpu.CompilerParams(
    dimension_semantics=("parallel",),
    vmem_limit_bytes=48 * 1024 * 1024,
)


# --------------------------------------------------------------------------
# In-kernel helpers
# --------------------------------------------------------------------------
def _conv3x3_im2col(x_bf16, pad_ref, w_ref):
    """3x3 'SAME' conv of one (H, W, Cin) tile as a single deep MXU matmul.

    x_bf16 : (H, W, Cin) bf16 activations
    pad_ref: (H+2, W+2, Cin) bf16 VMEM scratch (border zeroed here)
    w_ref  : (9*Cin, Cout) bf16 weights (im2col layout)
    returns: (H*W, Cout) f32 pre-activation
    """
    Hs = pad_ref.shape[0] - 2
    Ws = pad_ref.shape[1] - 2
    c_in = pad_ref.shape[2]

    # Zero only the 1-pixel border strips; write the interior once.
    pad_ref[0:1, :, :] = jnp.zeros((1, Ws + 2, c_in), pad_ref.dtype)
    pad_ref[Hs + 1:Hs + 2, :, :] = jnp.zeros((1, Ws + 2, c_in), pad_ref.dtype)
    pad_ref[:, 0:1, :] = jnp.zeros((Hs + 2, 1, c_in), pad_ref.dtype)
    pad_ref[:, Ws + 1:Ws + 2, :] = jnp.zeros((Hs + 2, 1, c_in), pad_ref.dtype)
    pad_ref[1:Hs + 1, 1:Ws + 1, :] = x_bf16

    # im2col staging tensor (H, W, 9*Cin) -> one matmul with K = 9*Cin.
    patches = jnp.concatenate(
        [pad_ref[dy:dy + Hs, dx:dx + Ws, :]
         for dy in range(3) for dx in range(3)],
        axis=-1)
    return jnp.dot(patches.reshape(Hs * Ws, 9 * c_in), w_ref[...],
                   preferred_element_type=jnp.float32)


def _channel_stats(acc):
    """Per-channel (sum, sum_of_squares) partials of an (M, C) f32 tile."""
    return jnp.concatenate(
        [jnp.sum(acc, axis=0, keepdims=True),
         jnp.sum(acc * acc, axis=0, keepdims=True)],
        axis=0)  # (2, C)


# --------------------------------------------------------------------------
# Kernels (grid over the batch axis; one image per grid step)
# --------------------------------------------------------------------------
def _pool_conv1_kernel(taps_ref, w1_ref, y1_ref, stat1_ref, pad_ref):
    # taps_ref : (Hp, Wp, 4*Cin) f32  -- channel-axis space-to-depth taps
    # w1_ref   : (9*Cin, Cmid)   bf16
    # y1_ref   : (Hp, Wp, Cmid)  f32  -- conv1 pre-BN output
    # stat1_ref: (2, Cmid)       f32  -- per-image (sum, sum_sq) for BN1
    Hp, Wp, c4 = taps_ref.shape
    cin = c4 // 4
    cmid = w1_ref.shape[1]

    t = taps_ref[...]
    # MaxPool2d(2): elementwise max over the 4 channel groups (f32).
    pooled = jnp.maximum(
        jnp.maximum(t[..., 0 * cin:1 * cin], t[..., 1 * cin:2 * cin]),
        jnp.maximum(t[..., 2 * cin:3 * cin], t[..., 3 * cin:4 * cin]))

    acc = _conv3x3_im2col(pooled.astype(pad_ref.dtype), pad_ref, w1_ref)
    y1_ref[...] = acc.reshape(Hp, Wp, cmid)
    stat1_ref[...] = _channel_stats(acc)


def _bn1_relu_conv2_kernel(y1_ref, scale_ref, shift_ref, w2_ref,
                           y2_ref, stat2_ref, pad_ref):
    # y1_ref   : (Hp, Wp, Cmid) f32, scale/shift: (1, Cmid) f32 (folded BN1)
    # w2_ref   : (9*Cmid, Cout) bf16
    Hp, Wp, cmid = y1_ref.shape
    cout = w2_ref.shape[1]

    h = jnp.maximum(y1_ref[...] * scale_ref[...] + shift_ref[...], 0.0)  # f32
    acc = _conv3x3_im2col(h.astype(pad_ref.dtype), pad_ref, w2_ref)
    y2_ref[...] = acc.reshape(Hp, Wp, cout)
    stat2_ref[...] = _channel_stats(acc)


def _bn2_relu_kernel(y2_ref, scale_ref, shift_ref, out_ref):
    # Final BN2 + ReLU, lane-dense (Hp, Wp*Cout) store.
    Hp, Wp, cout = y2_ref.shape
    h = jnp.maximum(y2_ref[...] * scale_ref[...] + shift_ref[...], 0.0)
    out_ref[...] = h.reshape(Hp, Wp * cout)


# --------------------------------------------------------------------------
# Wrapper
# --------------------------------------------------------------------------
def _fold_bn(stats, count, gamma, beta):
    """Reduce per-image partials -> per-channel (scale, shift) for BN+affine."""
    s = jnp.sum(stats, axis=0)                       # (2, C)
    mean = s[0] / count
    var = s[1] / count - mean * mean                 # E[x^2] - E[x]^2 (f32)
    scale = gamma * jax.lax.rsqrt(var + BN_EPS)
    shift = beta - mean * scale
    return scale.astype(jnp.float32), shift.astype(jnp.float32)


def down_forward_nhwc(x, w1, w2, g1, b1, g2, b2):
    """Down.forward in NHWC: x (N, H, W, Cin) -> (N, H//2, W//2, Cout)."""
    N, H, W, Cin = x.shape
    assert H % 2 == 0 and W % 2 == 0, "MaxPool2d(2) wrapper assumes even H, W"
    Hp, Wp = H // 2, W // 2
    Cmid, Cout = w1.shape[3], w2.shape[3]

    x = x.astype(jnp.float32)
    # glue: channel-axis space-to-depth of the four 2x2 pooling taps
    taps = jnp.concatenate(
        [x[:, 0::2, 0::2, :], x[:, 0::2, 1::2, :],
         x[:, 1::2, 0::2, :], x[:, 1::2, 1::2, :]], axis=-1)   # (N,Hp,Wp,4Cin)
    # glue: HWIO weights -> im2col layout (9*Cin, Cout), bf16 for the MXU
    w1m = w1.astype(jnp.bfloat16).reshape(9 * Cin, Cmid)
    w2m = w2.astype(jnp.bfloat16).reshape(9 * Cmid, Cout)

    # ---- pass 1: maxpool + conv1 (pre-BN) + per-image BN1 partials ----
    y1, stat1 = pl.pallas_call(
        _pool_conv1_kernel,
        grid=(N,),
        in_specs=[
            pl.BlockSpec((None, Hp, Wp, 4 * Cin), lambda n: (n, 0, 0, 0)),
            pl.BlockSpec((9 * Cin, Cmid), lambda n: (0, 0)),
        ],
        out_specs=(
            pl.BlockSpec((None, Hp, Wp, Cmid), lambda n: (n, 0, 0, 0)),
            pl.BlockSpec((None, 2, Cmid), lambda n: (n, 0, 0)),
        ),
        out_shape=(
            jax.ShapeDtypeStruct((N, Hp, Wp, Cmid), jnp.float32),
            jax.ShapeDtypeStruct((N, 2, Cmid), jnp.float32),
        ),
        scratch_shapes=[pltpu.VMEM((Hp + 2, Wp + 2, Cin), jnp.bfloat16)],
        compiler_params=_COMPILER_PARAMS,
    )(taps, w1m)

    count = N * Hp * Wp
    scale1, shift1 = _fold_bn(stat1, count, g1, b1)

    # ---- pass 2: BN1 + ReLU + conv2 (pre-BN) + per-image BN2 partials ----
    y2, stat2 = pl.pallas_call(
        _bn1_relu_conv2_kernel,
        grid=(N,),
        in_specs=[
            pl.BlockSpec((None, Hp, Wp, Cmid), lambda n: (n, 0, 0, 0)),
            pl.BlockSpec((1, Cmid), lambda n: (0, 0)),
            pl.BlockSpec((1, Cmid), lambda n: (0, 0)),
            pl.BlockSpec((9 * Cmid, Cout), lambda n: (0, 0)),
        ],
        out_specs=(
            pl.BlockSpec((None, Hp, Wp, Cout), lambda n: (n, 0, 0, 0)),
            pl.BlockSpec((None, 2, Cout), lambda n: (n, 0, 0)),
        ),
        out_shape=(
            jax.ShapeDtypeStruct((N, Hp, Wp, Cout), jnp.float32),
            jax.ShapeDtypeStruct((N, 2, Cout), jnp.float32),
        ),
        scratch_shapes=[pltpu.VMEM((Hp + 2, Wp + 2, Cmid), jnp.bfloat16)],
        compiler_params=_COMPILER_PARAMS,
    )(y1, scale1.reshape(1, Cmid), shift1.reshape(1, Cmid), w2m)

    scale2, shift2 = _fold_bn(stat2, count, g2, b2)

    # ---- pass 3: BN2 + ReLU with a lane-dense (Hp, Wp*Cout) output slab ----
    out = pl.pallas_call(
        _bn2_relu_kernel,
        grid=(N,),
        in_specs=[
            pl.BlockSpec((None, Hp, Wp, Cout), lambda n: (n, 0, 0, 0)),
            pl.BlockSpec((1, Cout), lambda n: (0, 0)),
            pl.BlockSpec((1, Cout), lambda n: (0, 0)),
        ],
        out_specs=pl.BlockSpec((None, Hp, Wp * Cout), lambda n: (n, 0, 0)),
        out_shape=jax.ShapeDtypeStruct((N, Hp, Wp * Cout), jnp.float32),
        compiler_params=_COMPILER_PARAMS,
    )(y2, scale2.reshape(1, Cout), shift2.reshape(1, Cout))

    return out.reshape(N, Hp, Wp, Cout)


def down_forward(x_nchw, w1, w2, g1, b1, g2, b2):
    """PyTorch-style NCHW interface; transposes only at this boundary."""
    out = down_forward_nhwc(jnp.transpose(x_nchw, (0, 2, 3, 1)),
                            w1, w2, g1, b1, g2, b2)
    return jnp.transpose(out, (0, 3, 1, 2))


# --------------------------------------------------------------------------
# Pure-JAX reference (same mixed-precision semantics) for correctness check
# --------------------------------------------------------------------------
def _reference_down(x_nchw, w1, w2, g1, b1, g2, b2):
    x = jnp.transpose(x_nchw, (0, 2, 3, 1)).astype(jnp.float32)
    p = jnp.maximum(jnp.maximum(x[:, 0::2, 0::2], x[:, 0::2, 1::2]),
                    jnp.maximum(x[:, 1::2, 0::2], x[:, 1::2, 1::2]))

    def block(h, w, g, b):
        y = jax.lax.conv_general_dilated(
            h.astype(jnp.bfloat16), w.astype(jnp.bfloat16),
            window_strides=(1, 1), padding="SAME",
            dimension_numbers=("NHWC", "HWIO", "NHWC"),
            preferred_element_type=jnp.float32)
        m = jnp.mean(y, axis=(0, 1, 2))
        v = jnp.mean(y * y, axis=(0, 1, 2)) - m * m
        scale = g * jax.lax.rsqrt(v + BN_EPS)
        shift = b - m * scale
        return jnp.maximum(y * scale + shift, 0.0)

    h = block(p, w1, g1, b1)
    h = block(h, w2, g2, b2)
    return jnp.transpose(h, (0, 3, 1, 2))


if __name__ == "__main__":
    # Down(in_channels=4, out_channels=8); mid_channels = out_channels = 8
    N, Cin, H, W = 2, 4, 16, 16
    Cmid, Cout = 8, 8

    key = jax.random.PRNGKey(0)
    kx, k1, k2, k3, k4, k5, k6 = jax.random.split(key, 7)

    x = jax.random.normal(kx, (N, Cin, H, W), jnp.float32)
    # Conv weights in HWIO layout (PyTorch OIHW weight transposed to (2,3,1,0))
    w1 = jax.random.normal(k1, (3, 3, Cin, Cmid), jnp.float32) * 0.2
    w2 = jax.random.normal(k2, (3, 3, Cmid, Cout), jnp.float32) * 0.2
    # BatchNorm affine params (non-trivial for a meaningful test)
    g1 = jax.random.uniform(k3, (Cmid,), jnp.float32, 0.5, 1.5)
    b1 = jax.random.normal(k4, (Cmid,), jnp.float32) * 0.1
    g2 = jax.random.uniform(k5, (Cout,), jnp.float32, 0.5, 1.5)
    b2 = jax.random.normal(k6, (Cout,), jnp.float32) * 0.1

    out = jax.block_until_ready(down_forward(x, w1, w2, g1, b1, g2, b2))
    ref = jax.block_until_ready(_reference_down(x, w1, w2, g1, b1, g2, b2))

    assert out.shape == (N, Cout, H // 2, W // 2), out.shape
    max_err = float(jnp.max(jnp.abs(out - ref)))
    assert max_err < 2e-2, max_err

    print("KERNEL_OK")
</pallas_src>

<mosaic_0001>
module attributes {stable_mosaic.version = 11 : i64} {
  func.func @_pool_conv1_kernel(%arg0: i32, %arg1: memref<1x8x8x16xf32, #tpu.memory_space<vmem>>, %arg2: memref<36x8xbf16, #tpu.memory_space<vmem>>, %arg3: memref<1x8x8x8xf32, #tpu.memory_space<vmem>>, %arg4: memref<1x2x8xf32, #tpu.memory_space<vmem>>, %arg5: memref<10x10x4xbf16, #tpu.memory_space<vmem>>) attributes {dimension_semantics = [#tpu.dimension_semantics<parallel>], iteration_bounds = array<i64: 2>, scalar_prefetch = 0 : i64, scratch_operands = 1 : i64, tpu.core_type = #tpu.core_type<tc>, window_params = [{transform_indices = @transform_0, window_bounds = array<i64: 1, 8, 8, 16>}, {pipeline_mode = #tpu.pipeline_mode<synchronous>, transform_indices = @transform_1, window_bounds = array<i64: 36, 8>}, {transform_indices = @transform_2, window_bounds = array<i64: 1, 8, 8, 8>}, {transform_indices = @transform_3, window_bounds = array<i64: 1, 2, 8>}]} {
    %c0 = arith.constant 0 : index
    %c0_0 = arith.constant 0 : index
    %c0_1 = arith.constant 0 : index
    %c0_2 = arith.constant 0 : index
    %0 = vector.load %arg1[%c0, %c0_0, %c0_1, %c0_2] : memref<1x8x8x16xf32, #tpu.memory_space<vmem>>, vector<1x8x8x16xf32>
    %1 = vector.shape_cast %0 : vector<1x8x8x16xf32> to vector<8x8x16xf32>
    %2 = vector.extract_strided_slice %1 {offsets = [0, 0, 0], sizes = [8, 8, 4], strides = [1, 1, 1]} : vector<8x8x16xf32> to vector<8x8x4xf32>
    %3 = vector.extract_strided_slice %1 {offsets = [0, 0, 4], sizes = [8, 8, 4], strides = [1, 1, 1]} : vector<8x8x16xf32> to vector<8x8x4xf32>
    %4 = arith.maximumf %2, %3 : vector<8x8x4xf32>
    %5 = vector.extract_strided_slice %1 {offsets = [0, 0, 8], sizes = [8, 8, 4], strides = [1, 1, 1]} : vector<8x8x16xf32> to vector<8x8x4xf32>
    %6 = vector.extract_strided_slice %1 {offsets = [0, 0, 12], sizes = [8, 8, 4], strides = [1, 1, 1]} : vector<8x8x16xf32> to vector<8x8x4xf32>
    %7 = arith.maximumf %5, %6 : vector<8x8x4xf32>
    %8 = arith.maximumf %4, %7 : vector<8x8x4xf32>
    %9 = arith.truncf %8 : vector<8x8x4xf32> to vector<8x8x4xbf16>
    %cst = arith.constant 0.000000e+00 : bf16
    %10 = vector.broadcast %cst : bf16 to vector<1x10x4xbf16>
    %c0_3 = arith.constant 0 : index
    %c0_4 = arith.constant 0 : index
    %c0_5 = arith.constant 0 : index
    %11 = vector.load %arg5[%c0_3, %c0_4, %c0_5] : memref<10x10x4xbf16, #tpu.memory_space<vmem>>, vector<1x10x4xbf16>
    tpu.vector_store %arg5[%c0_3, %c0_4, %c0_5], %10 {strides = array<i32>} : memref<10x10x4xbf16, #tpu.memory_space<vmem>>, vector<1x10x4xbf16>,
    %cst_6 = arith.constant 0.000000e+00 : bf16
    %12 = vector.broadcast %cst_6 : bf16 to vector<1x10x4xbf16>
    %c9 = arith.constant 9 : index
    %c0_7 = arith.constant 0 : index
    %c0_8 = arith.constant 0 : index
    %13 = vector.load %arg5[%c9, %c0_7, %c0_8] : memref<10x10x4xbf16, #tpu.memory_space<vmem>>, vector<1x10x4xbf16>
    tpu.vector_store %arg5[%c9, %c0_7, %c0_8], %12 {strides = array<i32>} : memref<10x10x4xbf16, #tpu.memory_space<vmem>>, vector<1x10x4xbf16>,
    %cst_9 = arith.constant 0.000000e+00 : bf16
    %14 = vector.broadcast %cst_9 : bf16 to vector<10x1x4xbf16>
    %c0_10 = arith.constant 0 : index
    %c0_11 = arith.constant 0 : index
    %c0_12 = arith.constant 0 : index
    %15 = vector.load %arg5[%c0_10, %c0_11, %c0_12] : memref<10x10x4xbf16, #tpu.memory_space<vmem>>, vector<10x1x4xbf16>
    tpu.vector_store %arg5[%c0_10, %c0_11, %c0_12], %14 {strides = array<i32>} : memref<10x10x4xbf16, #tpu.memory_space<vmem>>, vector<10x1x4xbf16>,
    %cst_13 = arith.constant 0.000000e+00 : bf16
    %16 = vector.broadcast %cst_13 : bf16 to vector<10x1x4xbf16>
    %c0_14 = arith.constant 0 : index
    %c9_15 = arith.constant 9 : index
    %c0_16 = arith.constant 0 : index
    %17 = vector.load %arg5[%c0_14, %c9_15, %c0_16] : memref<10x10x4xbf16, #tpu.memory_space<vmem>>, vector<10x1x4xbf16>
    tpu.vector_store %arg5[%c0_14, %c9_15, %c0_16], %16 {strides = array<i32>} : memref<10x10x4xbf16, #tpu.memory_space<vmem>>, vector<10x1x4xbf16>,
    %c1 = arith.constant 1 : index
    %c1_17 = arith.constant 1 : index
    %c0_18 = arith.constant 0 : index
    %18 = vector.load %arg5[%c1, %c1_17, %c0_18] : memref<10x10x4xbf16, #tpu.memory_space<vmem>>, vector<8x8x4xbf16>
    tpu.vector_store %arg5[%c1, %c1_17, %c0_18], %9 {strides = array<i32>} : memref<10x10x4xbf16, #tpu.memory_space<vmem>>, vector<8x8x4xbf16>,
    %c0_19 = arith.constant 0 : index
    %c0_20 = arith.constant 0 : index
    %c0_21 = arith.constant 0 : index
    %19 = vector.load %arg5[%c0_19, %c0_20, %c0_21] : memref<10x10x4xbf16, #tpu.memory_space<vmem>>, vector<8x8x4xbf16>
    %c0_22 = arith.constant 0 : index
    %c1_23 = arith.constant 1 : index
    %c0_24 = arith.constant 0 : index
    %20 = vector.load %arg5[%c0_22, %c1_23, %c0_24] : memref<10x10x4xbf16, #tpu.memory_space<vmem>>, vector<8x8x4xbf16>
    %c0_25 = arith.constant 0 : index
    %c2 = arith.constant 2 : index
    %c0_26 = arith.constant 0 : index
    %21 = vector.load %arg5[%c0_25, %c2, %c0_26] : memref<10x10x4xbf16, #tpu.memory_space<vmem>>, vector<8x8x4xbf16>
    %c1_27 = arith.constant 1 : index
    %c0_28 = arith.constant 0 : index
    %c0_29 = arith.constant 0 : index
    %22 = vector.load %arg5[%c1_27, %c0_28, %c0_29] : memref<10x10x4xbf16, #tpu.memory_space<vmem>>, vector<8x8x4xbf16>
    %c1_30 = arith.constant 1 : index
    %c1_31 = arith.constant 1 : index
    %c0_32 = arith.constant 0 : index
    %23 = vector.load %arg5[%c1_30, %c1_31, %c0_32] : memref<10x10x4xbf16, #tpu.memory_space<vmem>>, vector<8x8x4xbf16>
    %c1_33 = arith.constant 1 : index
    %c2_34 = arith.constant 2 : index
    %c0_35 = arith.constant 0 : index
    %24 = vector.load %arg5[%c1_33, %c2_34, %c0_35] : memref<10x10x4xbf16, #tpu.memory_space<vmem>>, vector<8x8x4xbf16>
    %c2_36 = arith.constant 2 : index
    %c0_37 = arith.constant 0 : index
    %c0_38 = arith.constant 0 : index
    %25 = vector.load %arg5[%c2_36, %c0_37, %c0_38] : memref<10x10x4xbf16, #tpu.memory_space<vmem>>, vector<8x8x4xbf16>
    %c2_39 = arith.constant 2 : index
    %c1_40 = arith.constant 1 : index
    %c0_41 = arith.constant 0 : index
    %26 = vector.load %arg5[%c2_39, %c1_40, %c0_41] : memref<10x10x4xbf16, #tpu.memory_space<vmem>>, vector<8x8x4xbf16>
    %c2_42 = arith.constant 2 : index
    %c2_43 = arith.constant 2 : index
    %c0_44 = arith.constant 0 : index
    %27 = vector.load %arg5[%c2_42, %c2_43, %c0_44] : memref<10x10x4xbf16, #tpu.memory_space<vmem>>, vector<8x8x4xbf16>
    %28 = tpu.concatenate %19, %20, %21, %22, %23, %24, %25, %26, %27 in 2 : vector<8x8x4xbf16>, vector<8x8x4xbf16>, vector<8x8x4xbf16>, vector<8x8x4xbf16>, vector<8x8x4xbf16>, vector<8x8x4xbf16>, vector<8x8x4xbf16>, vector<8x8x4xbf16>, vector<8x8x4xbf16> -> vector<8x8x36xbf16>
    %29 = vector.shape_cast %28 : vector<8x8x36xbf16> to vector<64x36xbf16>
    %c0_45 = arith.constant 0 : index
    %c0_46 = arith.constant 0 : index
    %30 = vector.load %arg2[%c0_45, %c0_46] : memref<36x8xbf16, #tpu.memory_space<vmem>>, vector<36x8xbf16>
    %cst_47 = arith.constant dense<0.000000e+00> : vector<64x8xf32>
    %31 = tpu.matmul %29, %30, %cst_47 {dimension_numbers = #tpu.dot_dimension_numbers<[1], [0], [0], [1], [0, 0, 1, 1], [], []>} : vector<64x36xbf16>, vector<36x8xbf16>, vector<64x8xf32> -> vector<64x8xf32>
    %32 = vector.shape_cast %31 : vector<64x8xf32> to vector<8x8x8xf32>
    %c0_48 = arith.constant 0 : index
    %c0_49 = arith.constant 0 : index
    %c0_50 = arith.constant 0 : index
    %c0_51 = arith.constant 0 : index
    %33 = vector.load %arg3[%c0_48, %c0_49, %c0_50, %c0_51] : memref<1x8x8x8xf32, #tpu.memory_space<vmem>>, vector<1x8x8x8xf32>
    %34 = vector.shape_cast %33 : vector<1x8x8x8xf32> to vector<8x8x8xf32>
    %35 = vector.shape_cast %32 : vector<8x8x8xf32> to vector<1x8x8x8xf32>
    tpu.vector_store %arg3[%c0_48, %c0_49, %c0_50, %c0_51], %35 {strides = array<i32>} : memref<1x8x8x8xf32, #tpu.memory_space<vmem>>, vector<1x8x8x8xf32>,
    %cst_52 = arith.constant dense<0.000000e+00> : vector<8xf32>
    %36 = vector.multi_reduction <add>, %31, %cst_52 [0] : vector<64x8xf32> to vector<8xf32>
    %37 = vector.shape_cast %36 : vector<8xf32> to vector<1x8xf32>
    %38 = arith.mulf %31, %31 : vector<64x8xf32>
    %cst_53 = arith.constant dense<0.000000e+00> : vector<8xf32>
    %39 = vector.multi_reduction <add>, %38, %cst_53 [0] : vector<64x8xf32> to vector<8xf32>
    %40 = vector.shape_cast %39 : vector<8xf32> to vector<1x8xf32>
    %41 = tpu.concatenate %37, %40 in 0 : vector<1x8xf32>, vector<1x8xf32> -> vector<2x8xf32>
    %c0_54 = arith.constant 0 : index
    %c0_55 = arith.constant 0 : index
    %c0_56 = arith.constant 0 : index
    %42 = vector.load %arg4[%c0_54, %c0_55, %c0_56] : memref<1x2x8xf32, #tpu.memory_space<vmem>>, vector<1x2x8xf32>
    %43 = vector.shape_cast %42 : vector<1x2x8xf32> to vector<2x8xf32>
    %44 = vector.shape_cast %41 : vector<2x8xf32> to vector<1x2x8xf32>
    tpu.vector_store %arg4[%c0_54, %c0_55, %c0_56], %44 {strides = array<i32>} : memref<1x2x8xf32, #tpu.memory_space<vmem>>, vector<1x2x8xf32>,
    return
  }
  func.func @transform_0(%arg0: i32) -> (i32, i32, i32, i32) {
    %c0_i32 = arith.constant 0 : i32
    %c0_i32_0 = arith.constant 0 : i32
    %c0_i32_1 = arith.constant 0 : i32
    %c0_i32_2 = arith.constant 0 : i32
    return %arg0, %c0_i32, %c0_i32_0, %c0_i32_1 : i32, i32, i32, i32
  }
  func.func @transform_1(%arg0: i32) -> (i32, i32) {
    %c0_i32 = arith.constant 0 : i32
    %c0_i32_0 = arith.constant 0 : i32
    %c0_i32_1 = arith.constant 0 : i32
    return %c0_i32, %c0_i32_0 : i32, i32
  }
  func.func @transform_2(%arg0: i32) -> (i32, i32, i32, i32) {
    %c0_i32 = arith.constant 0 : i32
    %c0_i32_0 = arith.constant 0 : i32
    %c0_i32_1 = arith.constant 0 : i32
    %c0_i32_2 = arith.constant 0 : i32
    return %arg0, %c0_i32, %c0_i32_0, %c0_i32_1 : i32, i32, i32, i32
  }
  func.func @transform_3(%arg0: i32) -> (i32, i32, i32) {
    %c0_i32 = arith.constant 0 : i32
    %c0_i32_0 = arith.constant 0 : i32
    %c0_i32_1 = arith.constant 0 : i32
    return %arg0, %c0_i32, %c0_i32_0 : i32, i32, i32
  }
}

</mosaic_0001>

<llo_original>
// kernel: tpu_custom_call.1
$region0: #{tpu_custom_call.1}
  #allocation0 [shape = 'u32[]', space=smem, size = 0x4, offset = 0x4, fixed_abs, tag = 'smem constant byte address 0x4 - core index']
  #allocation1 [shape = 'u32[144,128]{1,0:T(1,128)}', space=vmem, size = 0x12000, scoped, tag = 'internal scratch']
  #allocation2 [shape = 'bf16[10,10,4]{2,1,0:T(8,128)(2,1)}', space=vmem, size = 0xa000, scoped, tag = 'scratch operand']
  %s0 = inlined_call_operand.hbm [shape: f32[2,8,8,16], index: 0, kind: input, shape index: {}]
  %s1 = inlined_call_operand.vmem [shape: bf16[36,8], index: 1, kind: input, shape index: {}]
  %s2 = inlined_call_operand.hbm [shape: f32[2,8,8,8], index: 2, kind: output, shape index: {0}]
  %s3 = inlined_call_operand.hbm [shape: f32[2,2,8], index: 3, kind: output, shape index: {1}]
  %4 = xla_tuple %s2, %s3
  %s5 = sld [smem:[#allocation0]]
  $region53: #{tpu_custom_call.1} parent=0
    _
  %s7 = ssub.s32 1, %s5
  %s8 = scalar_select 0, %s7, %s5
  $region1: #{tpu_custom_call.1} parent=0
    #allocation3 [shape = 'u8[65536]{0}', space=vmem, size = 0x10000, scoped, tag = 'input window, operand 0']
    #allocation4 [shape = 's32[2]{0}', space=sflag, size = 0x8, scoped, tag = 'scoped memory for tpu_custom_call.1']
    #allocation5 [shape = 's32[2]{0}', space=sflag, size = 0x8, scoped, tag = 'scoped memory for tpu_custom_call.1']
    #allocation6 [shape = 'u8[65536]{0}', space=vmem, size = 0x10000, scoped, tag = 'output window, operand 0']
    #allocation7 [shape = 'u8[2048]{0}', space=vmem, size = 0x800, scoped, tag = 'output window, operand 1']
    #allocation8 [shape = 's32[2]{0}', space=sflag, size = 0x8, scoped, tag = 'scoped memory for tpu_custom_call.1']
    %9 = vsyncpa [#allocation4], 0
    %s10 = scalar_lea.sflag [#allocation4], 1
    %11 = vsyncpa %s10, 0
    %12 = vsyncpa [#allocation5], 0
    %s13 = scalar_lea.sflag [#allocation5], 1
    %14 = vsyncpa %s13, 0
    %15 = vsyncpa [#allocation8], 0
    %s16 = scalar_lea.sflag [#allocation8], 1
    %17 = vsyncpa %s16, 0
    loop: start=0, step=1, limit=4
    $region2: #{tpu_custom_call.1} parent=1 // loop_pre_header
      _
    $region3: #{tpu_custom_call.1} parent=1 // loop_header
      %s19 = sphi 0, %s23
      %p20 = scmp.ge.s32.totalorder %s19, 4
      %s29 = sphi 0, %s31
      %s32 = sphi 0, %s29
      %s33 = sphi 0, %s32
      %s49 = sphi 0, %s33
      %s53 = sphi 0, %s53
      %s55 = sphi 0, %s53
      %s56 = sphi 0, %s55
      %s70 = sphi 0, %s56
      %s76 = sphi 0, %s78
      %s79 = sphi 0, %s76
      %s80 = sphi 0, %s79
      %s96 = sphi 0, %s80
      %s102 = sphi 0, %s104
      %s105 = sphi 0, %s102
      %s106 = sphi 0, %s105
      %s122 = sphi 0, %s106
    $region4: #{tpu_custom_call.1} parent=1 // loop_header_branch
      %22 = sbr.rel (%p20) target = $region8
    $region5: #{tpu_custom_call.1} parent=1 // loop_body
      %s24 = ssub.s32 %s19, 1
      %s25 = ssub.s32 %s19, 2
      %s26 = sadd.s32 %s19, 1
      %s27 = ssub.s32 %s19, %s26
      %p28 = scmp.eq.s32.totalorder %s27, 0
      %s30 = sadd.s32 %s29, 1
      %s31 = scalar_select %p28, %s29, %s30
      %p34 = pneg %p28
      %p35 = scmp.eq.s32.totalorder %s19, 1
      %p36 = por %p34, %p35
      %p37 = scmp.ne.s32.totalorder %s29, %s32
      %p38 = scmp.eq.s32.totalorder %s19, 0
      %p39 = por %p37, %p38
      %p40 = scmp.ne.s32.totalorder %s29, %s32
      %p41 = scmp.eq.s32.totalorder %s24, 1
      %p42 = por %p40, %p41
      %p43 = scmp.ne.s32.totalorder %s32, %s33
      %p44 = scmp.eq.s32.totalorder %s24, 0
      %p45 = por %p43, %p44
      %p46 = scmp.ne.s32.totalorder %s32, %s33
      %p47 = scmp.eq.s32.totalorder %s25, 1
      %p48 = por %p46, %p47
      %p50 = scmp.ne.s32.totalorder %s33, %s49
      %p51 = scmp.eq.s32.totalorder %s25, 0
      %p52 = por %p50, %p51
      %s54 = sadd.s32 %s53, 1
      %p57 = scmp.eq.s32.totalorder %s19, 1
      %p58 = scmp.ne.s32.totalorder %s53, %s55
      %p59 = scmp.eq.s32.totalorder %s19, 0
      %p60 = por %p58, %p59
      %p61 = scmp.ne.s32.totalorder %s53, %s55
      %p62 = scmp.eq.s32.totalorder %s24, 1
      %p63 = por %p61, %p62
      %p64 = scmp.ne.s32.totalorder %s55, %s56
      %p65 = scmp.eq.s32.totalorder %s24, 0
      %p66 = por %p64, %p65
      %p67 = scmp.ne.s32.totalorder %s55, %s56
      %p68 = scmp.eq.s32.totalorder %s25, 1
      %p69 = por %p67, %p68
      %p71 = scmp.ne.s32.totalorder %s56, %s70
      %p72 = scmp.eq.s32.totalorder %s25, 0
      %p73 = por %p71, %p72
      %s74 = ssub.s32 %s19, %s26
      %p75 = scmp.eq.s32.totalorder %s74, 0
      %s77 = sadd.s32 %s76, 1
      %s78 = scalar_select %p75, %s76, %s77
      %p81 = pneg %p75
      %p82 = scmp.eq.s32.totalorder %s19, 1
      %p83 = por %p81, %p82
      %p84 = scmp.ne.s32.totalorder %s76, %s79
      %p85 = scmp.eq.s32.totalorder %s19, 0
      %p86 = por %p84, %p85
      %p87 = scmp.ne.s32.totalorder %s76, %s79
      %p88 = scmp.eq.s32.totalorder %s24, 1
      %p89 = por %p87, %p88
      %p90 = scmp.ne.s32.totalorder %s79, %s80
      %p91 = scmp.eq.s32.totalorder %s24, 0
      %p92 = por %p90, %p91
      %p93 = scmp.ne.s32.totalorder %s79, %s80
      %p94 = scmp.eq.s32.totalorder %s25, 1
      %p95 = por %p93, %p94
      %p97 = scmp.ne.s32.totalorder %s80, %s96
      %p98 = scmp.eq.s32.totalorder %s25, 0
      %p99 = por %p97, %p98
      %s100 = ssub.s32 %s19, %s26
      %p101 = scmp.eq.s32.totalorder %s100, 0
      %s103 = sadd.s32 %s102, 1
      %s104 = scalar_select %p101, %s102, %s103
      %p107 = pneg %p101
      %p108 = scmp.eq.s32.totalorder %s19, 1
      %p109 = por %p107, %p108
      %p110 = scmp.ne.s32.totalorder %s102, %s105
      %p111 = scmp.eq.s32.totalorder %s19, 0
      %p112 = por %p110, %p111
      %p113 = scmp.ne.s32.totalorder %s102, %s105
      %p114 = scmp.eq.s32.totalorder %s24, 1
      %p115 = por %p113, %p114
      %p116 = scmp.ne.s32.totalorder %s105, %s106
      %p117 = scmp.eq.s32.totalorder %s24, 0
      %p118 = por %p116, %p117
      %p119 = scmp.ne.s32.totalorder %s105, %s106
      %p120 = scmp.eq.s32.totalorder %s25, 1
      %p121 = por %p119, %p120
      %p123 = scmp.ne.s32.totalorder %s106, %s122
      %p124 = scmp.eq.s32.totalorder %s25, 0
      %p125 = por %p123, %p124
      %p126 = scmp.le.s32.totalorder 1, %s19
      %p127 = scmp.lt.s32.totalorder %s19, 3
      %p128 = pnand %p126, %p127
      %p129 = pneg %p128
      // Predicated region
      $region9: #{tpu_custom_call.1} parent=5 // pred_check
        _
      $region10: #{tpu_custom_call.1} parent=5 // pred_check_branch
        %131 = sbr.rel (%p128) target = $region12
      $region11: #{tpu_custom_call.1} parent=5 // pred_region
        %s132 = ssub.s32 %s19, 1
        // Predicated region
        $region13: #{tpu_custom_call.1} parent=11 // pred_check
          %p133 = pneg %p66
        $region14: #{tpu_custom_call.1} parent=11 // pred_check_branch
          %135 = sbr.rel (%p133) target = $region16
        $region15: #{tpu_custom_call.1} parent=11 // pred_region
          _
        $region16: #{tpu_custom_call.1} parent=11 // pred_fallthru
          _
      $region12: #{tpu_custom_call.1} parent=5 // pred_fallthru
        _
      %p136 = scmp.lt.s32.totalorder %s19, 2
      // Predicated region
      $region17: #{tpu_custom_call.1} parent=5 // pred_check
        %p137 = pneg %p136
      $region18: #{tpu_custom_call.1} parent=5 // pred_check_branch
        %139 = sbr.rel (%p137) target = $region20
      $region19: #{tpu_custom_call.1} parent=5 // pred_region
        // Predicated region
        $region21: #{tpu_custom_call.1} parent=19 // pred_check
          %p140 = pneg %p39
        $region22: #{tpu_custom_call.1} parent=19 // pred_check_branch
          %142 = sbr.rel (%p140) target = $region24
        $region23: #{tpu_custom_call.1} parent=19 // pred_region
          %s143 = sand.u32 %s29, 1
          %s144 = scalar_lea.sflag [#allocation4], %s143
          %s145 = sand.u32 %s29, 1
          %s146 = smul.addr %s145, 64
          %s147 = scalar_lea.vmem [#allocation3], %s146
          %s149 = ssub.s32 1024, 1024
          %150 = vsyncadd %s144, %s149
          %s151 = smul.addr %s19, 8
          %s152 = smul.addr %s151, 128
          %s153 = scalar_lea.hbm %s0, %s152
          %s154 = sshll.u32 %s147, 4
          %s155 = int_to_ptr.vmem [resolvable:$true] %s154
          %160 = dma.hbm_to_vmem [thread:$0]  %s153, 1024, %s155, %s144, 128, 128, 8
        $region24: #{tpu_custom_call.1} parent=19 // pred_fallthru
          _
      $region20: #{tpu_custom_call.1} parent=5 // pred_fallthru
        _
      %p161 = scmp.le.s32.totalorder 1, %s19
      %p162 = scmp.lt.s32.totalorder %s19, 3
      %p163 = pnand %p161, %p162
      %p164 = pneg %p163
      // Predicated region
      $region25: #{tpu_custom_call.1} parent=5 // pred_check
        _
      $region26: #{tpu_custom_call.1} parent=5 // pred_check_branch
        %166 = sbr.rel (%p163) target = $region28
      $region27: #{tpu_custom_call.1} parent=5 // pred_region
        %s167 = ssub.s32 %s19, 1
        %s168 = sand.u32 %s32, 1
        %s169 = scalar_lea.sflag [#allocation4], %s168
        %s170 = sand.u32 %s32, 1
        %s171 = smul.addr %s170, 64
        %s172 = scalar_lea.vmem [#allocation3], %s171
        // Predicated region
        $region29: #{tpu_custom_call.1} parent=27 // pred_check
          %p173 = pneg %p45
        $region30: #{tpu_custom_call.1} parent=27 // pred_check_branch
          %175 = sbr.rel (%p173) target = $region32
        $region31: #{tpu_custom_call.1} parent=27 // pred_region
          %176 = dma.done %s169, 1024
        $region32: #{tpu_custom_call.1} parent=27 // pred_fallthru
          _
        %s177 = sand.u32 %s32, 1
        %s178 = scalar_lea.sflag [#allocation4], %s177
        %s179 = sand.u32 %s32, 1
        %s180 = smul.addr %s179, 64
        %s181 = scalar_lea.vmem [#allocation3], %s180
        %p182 = pneg %p45
        %p183 = pneg %p42
        %p184 = pneg %p66
        %p185 = pneg %p63
        %p186 = pneg %p92
        %p187 = pneg %p89
        %s188 = sand.u32 %s79, 1
        %s189 = scalar_lea.sflag [#allocation5], %s188
        %s190 = sand.u32 %s79, 1
        %s191 = smul.addr %s190, 64
        %s192 = scalar_lea.vmem [#allocation6], %s191
        %p193 = pneg %p118
        %p194 = pneg %p115
        %s195 = sand.u32 %s105, 1
        %s196 = scalar_lea.sflag [#allocation8], %s195
        %s197 = sand.u32 %s105, 1
        %s198 = smul.addr %s197, 2
        %s199 = scalar_lea.vmem [#allocation7], %s198
        %v201 = vld [vmem:[%s172] sm:$0xff]
        %v202 = vld [vmem:[%s172 + $0x8] sm:$0xff]
        %v203 = vld [vmem:[%s172 + $0x10] sm:$0xff]
        %v204 = vld [vmem:[%s172 + $0x18] sm:$0xff]
        %v205 = vld [vmem:[%s172 + $0x20] sm:$0xff]
        %v206 = vld [vmem:[%s172 + $0x28] sm:$0xff]
        %v207 = vld [vmem:[%s172 + $0x30] sm:$0xff]
        %v208 = vld [vmem:[%s172 + $0x38] sm:$0xff]
        %217 = vrot.lane.b32.xlu0 %v201, 124
        %v218 = vpop.permute.xlu0 %217
        %219 = vrot.lane.b32.xlu0 %v202, 124
        %v220 = vpop.permute.xlu0 %219
        %221 = vrot.lane.b32.xlu0 %v203, 124
        %v222 = vpop.permute.xlu0 %221
        %223 = vrot.lane.b32.xlu0 %v204, 124
        %v224 = vpop.permute.xlu0 %223
        %225 = vrot.lane.b32.xlu0 %v205, 124
        %v226 = vpop.permute.xlu0 %225
        %227 = vrot.lane.b32.xlu0 %v206, 124
        %v228 = vpop.permute.xlu0 %227
        %229 = vrot.lane.b32.xlu0 %v207, 124
        %v230 = vpop.permute.xlu0 %229
        %231 = vrot.lane.b32.xlu0 %v208, 124
        %v232 = vpop.permute.xlu0 %231
        %v241 = vmax.f32 %v201, %v218
        %v242 = vmax.f32 %v202, %v220
        %v243 = vmax.f32 %v203, %v222
        %v244 = vmax.f32 %v204, %v224
        %v245 = vmax.f32 %v205, %v226
        %v246 = vmax.f32 %v206, %v228
        %v247 = vmax.f32 %v207, %v230
        %v248 = vmax.f32 %v208, %v232
        %257 = vrot.lane.b32.xlu0 %v241, 120
        %v258 = vpop.permute.xlu0 %257
        %259 = vrot.lane.b32.xlu0 %v242, 120
        %v260 = vpop.permute.xlu0 %259
        %261 = vrot.lane.b32.xlu0 %v243, 120
        %v262 = vpop.permute.xlu0 %261
        %263 = vrot.lane.b32.xlu0 %v244, 120
        %v264 = vpop.permute.xlu0 %263
        %265 = vrot.lane.b32.xlu0 %v245, 120
        %v266 = vpop.permute.xlu0 %265
        %267 = vrot.lane.b32.xlu0 %v246, 120
        %v268 = vpop.permute.xlu0 %267
        %269 = vrot.lane.b32.xlu0 %v247, 120
        %v270 = vpop.permute.xlu0 %269
        %271 = vrot.lane.b32.xlu0 %v248, 120
        %v272 = vpop.permute.xlu0 %271
        %v281 = vmax.f32 %v241, %v258
        %v282 = vmax.f32 %v242, %v260
        %v283 = vmax.f32 %v243, %v262
        %v284 = vmax.f32 %v244, %v264
        %v285 = vmax.f32 %v245, %v266
        %v286 = vmax.f32 %v246, %v268
        %v287 = vmax.f32 %v247, %v270
        %v288 = vmax.f32 %v248, %v272
        %v289 = vpack.c.bf16 %v281, %v281
        %v290 = vpack.c.bf16 %v282, %v282
        %v291 = vpack.c.bf16 %v283, %v283
        %v292 = vpack.c.bf16 %v284, %v284
        %v293 = vpack.c.bf16 %v285, %v285
        %v294 = vpack.c.bf16 %v286, %v286
        %v295 = vpack.c.bf16 %v287, %v287
        %v296 = vpack.c.bf16 %v288, %v288
        %vm297 = vcmask 27648
        %298 = vst.msk [vmem:[#allocation2] sm:$0xf] %vm297, 0
        %vm299 = vcmask 24576
        %300 = vst.msk [vmem:[#allocation2 + $0x4] sm:$0x1] %vm299, 0
        %s301 = scalar_lea.vmem [#allocation2], 72
        %302 = vst.msk [vmem:[%s301] sm:$0xf] %vm297, 0
        %303 = vst.msk [vmem:[%s301 + $0x4] sm:$0x1] %vm299, 0
        %vm304 = vcmask 24576
        %vm305 = vsmask.f32 256
        %vm306 = vmand %vm304, %vm305
        %v307 = vld [vmem:[#allocation2] sm:$0x1]
        %v308 = vsel %vm306, 0, %v307
        %309 = vst [vmem:[#allocation2] sm:$0x1] %v308
        %v310 = vld [vmem:[#allocation2 + $0x8] sm:$0x1]
        %v311 = vsel %vm306, 0, %v310
        %312 = vst [vmem:[#allocation2 + $0x8] sm:$0x1] %v311
        %v313 = vld [vmem:[#allocation2 + $0x10] sm:$0x1]
        %v314 = vsel %vm306, 0, %v313
        %315 = vst [vmem:[#allocation2 + $0x10] sm:$0x1] %v314
        %v316 = vld [vmem:[#allocation2 + $0x18] sm:$0x1]
        %v317 = vsel %vm306, 0, %v316
        %318 = vst [vmem:[#allocation2 + $0x18] sm:$0x1] %v317
        %v319 = vld [vmem:[#allocation2 + $0x20] sm:$0x1]
        %v320 = vsel %vm306, 0, %v319
        %321 = vst [vmem:[#allocation2 + $0x20] sm:$0x1] %v320
        %v322 = vld [vmem:[#allocation2 + $0x28] sm:$0x1]
        %v323 = vsel %vm306, 0, %v322
        %324 = vst [vmem:[#allocation2 + $0x28] sm:$0x1] %v323
        %v325 = vld [vmem:[#allocation2 + $0x30] sm:$0x1]
        %v326 = vsel %vm306, 0, %v325
        %327 = vst [vmem:[#allocation2 + $0x30] sm:$0x1] %v326
        %v328 = vld [vmem:[#allocation2 + $0x38] sm:$0x1]
        %v329 = vsel %vm306, 0, %v328
        %330 = vst [vmem:[#allocation2 + $0x38] sm:$0x1] %v329
        %v331 = vld [vmem:[#allocation2 + $0x40] sm:$0x1]
        %v332 = vsel %vm306, 0, %v331
        %333 = vst [vmem:[#allocation2 + $0x40] sm:$0x1] %v332
        %v334 = vld [vmem:[#allocation2 + $0x48] sm:$0x1]
        %v335 = vsel %vm306, 0, %v334
        %336 = vst [vmem:[#allocation2 + $0x48] sm:$0x1] %v335
        %vm337 = vsmask.f32 7938
        %vm338 = vmand %vm304, %vm337
        %v339 = vld [vmem:[#allocation2 + $0x4] sm:$0x1]
        %v340 = vsel %vm338, 0, %v339
        %341 = vst [vmem:[#allocation2 + $0x4] sm:$0x1] %v340
        %v342 = vld [vmem:[#allocation2 + $0xc] sm:$0x1]
        %v343 = vsel %vm338, 0, %v342
        %344 = vst [vmem:[#allocation2 + $0xc] sm:$0x1] %v343
        %v345 = vld [vmem:[#allocation2 + $0x14] sm:$0x1]
        %v346 = vsel %vm338, 0, %v345
        %347 = vst [vmem:[#allocation2 + $0x14] sm:$0x1] %v346
        %v348 = vld [vmem:[#allocation2 + $0x1c] sm:$0x1]
        %v349 = vsel %vm338, 0, %v348
        %350 = vst [vmem:[#allocation2 + $0x1c] sm:$0x1] %v349
        %v351 = vld [vmem:[#allocation2 + $0x24] sm:$0x1]
        %v352 = vsel %vm338, 0, %v351
        %353 = vst [vmem:[#allocation2 + $0x24] sm:$0x1] %v352
        %v354 = vld [vmem:[#allocation2 + $0x2c] sm:$0x1]
        %v355 = vsel %vm338, 0, %v354
        %356 = vst [vmem:[#allocation2 + $0x2c] sm:$0x1] %v355
        %v357 = vld [vmem:[#allocation2 + $0x34] sm:$0x1]
        %v358 = vsel %vm338, 0, %v357
        %359 = vst [vmem:[#allocation2 + $0x34] sm:$0x1] %v358
        %v360 = vld [vmem:[#allocation2 + $0x3c] sm:$0x1]
        %v361 = vsel %vm338, 0, %v360
        %362 = vst [vmem:[#allocation2 + $0x3c] sm:$0x1] %v361
        %v363 = vld [vmem:[#allocation2 + $0x44] sm:$0x1]
        %v364 = vsel %vm338, 0, %v363
        %365 = vst [vmem:[#allocation2 + $0x44] sm:$0x1] %v364
        %v366 = vld [vmem:[#allocation2 + $0x4c] sm:$0x1]
        %v367 = vsel %vm338, 0, %v366
        %368 = vst [vmem:[#allocation2 + $0x4c] sm:$0x1] %v367
        %v377 = vunpack.c.l.b16 %v289
        %v378 = vunpack.c.l.b16 %v290
        %v379 = vunpack.c.l.b16 %v291
        %v380 = vunpack.c.l.b16 %v292
        %v381 = vunpack.c.l.b16 %v293
        %v382 = vunpack.c.l.b16 %v294
        %v383 = vunpack.c.l.b16 %v295
        %v384 = vunpack.c.l.b16 %v296
        %v385 = vpack.c.b16 %v377, %v377
        %v386 = vpack.c.b16 %v378, %v378
        %v387 = vpack.c.b16 %v379, %v379
        %v388 = vpack.c.b16 %v380, %v380
        %v389 = vpack.c.b16 %v381, %v381
        %v390 = vpack.c.b16 %v382, %v382
        %v391 = vpack.c.b16 %v383, %v383
        %v392 = vpack.c.b16 %v384, %v384
        %v394 = vshrl.u32 %v385, 16
        %v396 = vrot.slane %v394, 7
        %v397 = vshll.u32 %v385, 16
        %v399 = vor.u32 %v396, %v397
        %v400 = vrot.slane %v396, 4
        %v402 = vshrl.u32 %v386, 16
        %v404 = vrot.slane %v402, 7
        %v405 = vshll.u32 %v386, 16
        %v407 = vor.u32 %v404, %v405
        %v408 = vrot.slane %v404, 4
        %v410 = vshrl.u32 %v387, 16
        %v412 = vrot.slane %v410, 7
        %v413 = vshll.u32 %v387, 16
        %v415 = vor.u32 %v412, %v413
        %v416 = vrot.slane %v412, 4
        %v418 = vshrl.u32 %v388, 16
        %v420 = vrot.slane %v418, 7
        %v421 = vshll.u32 %v388, 16
        %v423 = vor.u32 %v420, %v421
        %v424 = vrot.slane %v420, 4
        %v426 = vshrl.u32 %v389, 16
        %v428 = vrot.slane %v426, 7
        %v429 = vshll.u32 %v389, 16
        %v431 = vor.u32 %v428, %v429
        %v432 = vrot.slane %v428, 4
        %v434 = vshrl.u32 %v390, 16
        %v436 = vrot.slane %v434, 7
        %v437 = vshll.u32 %v390, 16
        %v439 = vor.u32 %v436, %v437
        %v440 = vrot.slane %v436, 4
        %v442 = vshrl.u32 %v391, 16
        %v444 = vrot.slane %v442, 7
        %v445 = vshll.u32 %v391, 16
        %v447 = vor.u32 %v444, %v445
        %v448 = vrot.slane %v444, 4
        %v450 = vshrl.u32 %v392, 16
        %v452 = vrot.slane %v450, 7
        %v453 = vshll.u32 %v392, 16
        %v455 = vor.u32 %v452, %v453
        %v456 = vrot.slane %v452, 4
        %s473 = scalar_lea.vmem [#allocation2], 8
        %vm474 = vcmask 27648
        %vm475 = vmand %vm474, %vm337
        %v476 = vld [vmem:[%s473] sm:$0xf]
        %v477 = vsel %vm475, %v399, %v476
        %478 = vst [vmem:[%s473] sm:$0xf] %v477
        %v479 = vld [vmem:[%s473 + $0x4] sm:$0x1]
        %v480 = vsel %vm306, %v400, %v479
        %481 = vst [vmem:[%s473 + $0x4] sm:$0x1] %v480
        %v482 = vld [vmem:[%s473 + $0x8] sm:$0xf]
        %v483 = vsel %vm475, %v407, %v482
        %484 = vst [vmem:[%s473 + $0x8] sm:$0xf] %v483
        %v485 = vld [vmem:[%s473 + $0xc] sm:$0x1]
        %v486 = vsel %vm306, %v408, %v485
        %487 = vst [vmem:[%s473 + $0xc] sm:$0x1] %v486
        %v488 = vld [vmem:[%s473 + $0x10] sm:$0xf]
        %v489 = vsel %vm475, %v415, %v488
        %490 = vst [vmem:[%s473 + $0x10] sm:$0xf] %v489
        %v491 = vld [vmem:[%s473 + $0x14] sm:$0x1]
        %v492 = vsel %vm306, %v416, %v491
        %493 = vst [vmem:[%s473 + $0x14] sm:$0x1] %v492
        %v494 = vld [vmem:[%s473 + $0x18] sm:$0xf]
        %v495 = vsel %vm475, %v423, %v494
        %496 = vst [vmem:[%s473 + $0x18] sm:$0xf] %v495
        %v497 = vld [vmem:[%s473 + $0x1c] sm:$0x1]
        %v498 = vsel %vm306, %v424, %v497
        %499 = vst [vmem:[%s473 + $0x1c] sm:$0x1] %v498
        %v500 = vld [vmem:[%s473 + $0x20] sm:$0xf]
        %v501 = vsel %vm475, %v431, %v500
        %502 = vst [vmem:[%s473 + $0x20] sm:$0xf] %v501
        %v503 = vld [vmem:[%s473 + $0x24] sm:$0x1]
        %v504 = vsel %vm306, %v432, %v503
        %505 = vst [vmem:[%s473 + $0x24] sm:$0x1] %v504
        %v506 = vld [vmem:[%s473 + $0x28] sm:$0xf]
        %v507 = vsel %vm475, %v439, %v506
        %508 = vst [vmem:[%s473 + $0x28] sm:$0xf] %v507
        %v509 = vld [vmem:[%s473 + $0x2c] sm:$0x1]
        %v510 = vsel %vm306, %v440, %v509
        %511 = vst [vmem:[%s473 + $0x2c] sm:$0x1] %v510
        %v512 = vld [vmem:[%s473 + $0x30] sm:$0xf]
        %v513 = vsel %vm475, %v447, %v512
        %514 = vst [vmem:[%s473 + $0x30] sm:$0xf] %v513
        %v515 = vld [vmem:[%s473 + $0x34] sm:$0x1]
        %v516 = vsel %vm306, %v448, %v515
        %517 = vst [vmem:[%s473 + $0x34] sm:$0x1] %v516
        %v518 = vld [vmem:[%s473 + $0x38] sm:$0xf]
        %v519 = vsel %vm475, %v455, %v518
        %520 = vst [vmem:[%s473 + $0x38] sm:$0xf] %v519
        %v521 = vld [vmem:[%s473 + $0x3c] sm:$0x1]
        %v522 = vsel %vm306, %v456, %v521
        %523 = vst [vmem:[%s473 + $0x3c] sm:$0x1] %v522
        %v524 = vld [vmem:[#allocation2] sm:$0xf]
        %v525 = vld [vmem:[#allocation2 + $0x8] sm:$0xf]
        %v526 = vld [vmem:[#allocation2 + $0x10] sm:$0xf]
        %v527 = vld [vmem:[#allocation2 + $0x18] sm:$0xf]
        %v528 = vld [vmem:[#allocation2 + $0x20] sm:$0xf]
        %v529 = vld [vmem:[#allocation2 + $0x28] sm:$0xf]
        %v530 = vld [vmem:[#allocation2 + $0x30] sm:$0xf]
        %v531 = vld [vmem:[#allocation2 + $0x38] sm:$0xf]
        %v532 = vld [vmem:[#allocation2 + $0x4] sm:$0x1]
        %v533 = vld [vmem:[#allocation2 + $0xc] sm:$0x1]
        %v534 = vld [vmem:[#allocation2 + $0x14] sm:$0x1]
        %v535 = vld [vmem:[#allocation2 + $0x1c] sm:$0x1]
        %v536 = vld [vmem:[#allocation2 + $0x24] sm:$0x1]
        %v537 = vld [vmem:[#allocation2 + $0x2c] sm:$0x1]
        %v538 = vld [vmem:[#allocation2 + $0x34] sm:$0x1]
        %v539 = vld [vmem:[#allocation2 + $0x3c] sm:$0x1]
        %v540 = vld [vmem:[#allocation2] sm:$0xe]
        %v541 = vld [vmem:[#allocation2 + $0x8] sm:$0xe]
        %v542 = vld [vmem:[#allocation2 + $0x10] sm:$0xe]
        %v543 = vld [vmem:[#allocation2 + $0x18] sm:$0xe]
        %v544 = vld [vmem:[#allocation2 + $0x20] sm:$0xe]
        %v545 = vld [vmem:[#allocation2 + $0x28] sm:$0xe]
        %v546 = vld [vmem:[#allocation2 + $0x30] sm:$0xe]
        %v547 = vld [vmem:[#allocation2 + $0x38] sm:$0xe]
        %v548 = vld [vmem:[%s473] sm:$0xf]
        %v549 = vld [vmem:[%s473 + $0x8] sm:$0xf]
        %v550 = vld [vmem:[%s473 + $0x10] sm:$0xf]
        %v551 = vld [vmem:[%s473 + $0x18] sm:$0xf]
        %v552 = vld [vmem:[%s473 + $0x20] sm:$0xf]
        %v553 = vld [vmem:[%s473 + $0x28] sm:$0xf]
        %v554 = vld [vmem:[%s473 + $0x30] sm:$0xf]
        %v555 = vld [vmem:[%s473 + $0x38] sm:$0xf]
        %v556 = vld [vmem:[%s473 + $0x4] sm:$0x1]
        %v557 = vld [vmem:[%s473 + $0xc] sm:$0x1]
        %v558 = vld [vmem:[%s473 + $0x14] sm:$0x1]
        %v559 = vld [vmem:[%s473 + $0x1c] sm:$0x1]
        %v560 = vld [vmem:[%s473 + $0x24] sm:$0x1]
        %v561 = vld [vmem:[%s473 + $0x2c] sm:$0x1]
        %v562 = vld [vmem:[%s473 + $0x34] sm:$0x1]
        %v563 = vld [vmem:[%s473 + $0x3c] sm:$0x1]
        %v564 = vld [vmem:[%s473] sm:$0xe]
        %v565 = vld [vmem:[%s473 + $0x8] sm:$0xe]
        %v566 = vld [vmem:[%s473 + $0x10] sm:$0xe]
        %v567 = vld [vmem:[%s473 + $0x18] sm:$0xe]
        %v568 = vld [vmem:[%s473 + $0x20] sm:$0xe]
        %v569 = vld [vmem:[%s473 + $0x28] sm:$0xe]
        %v570 = vld [vmem:[%s473 + $0x30] sm:$0xe]
        %v571 = vld [vmem:[%s473 + $0x38] sm:$0xe]
        %s572 = scalar_lea.vmem [#allocation2], 16
        %v573 = vld [vmem:[%s572] sm:$0xf]
        %v574 = vld [vmem:[%s572 + $0x8] sm:$0xf]
        %v575 = vld [vmem:[%s572 + $0x10] sm:$0xf]
        %v576 = vld [vmem:[%s572 + $0x18] sm:$0xf]
        %v577 = vld [vmem:[%s572 + $0x20] sm:$0xf]
        %v578 = vld [vmem:[%s572 + $0x28] sm:$0xf]
        %v579 = vld [vmem:[%s572 + $0x30] sm:$0xf]
        %v580 = vld [vmem:[%s572 + $0x38] sm:$0xf]
        %v581 = vld [vmem:[%s572 + $0x4] sm:$0x1]
        %v582 = vld [vmem:[%s572 + $0xc] sm:$0x1]
        %v583 = vld [vmem:[%s572 + $0x14] sm:$0x1]
        %v584 = vld [vmem:[%s572 + $0x1c] sm:$0x1]
        %v585 = vld [vmem:[%s572 + $0x24] sm:$0x1]
        %v586 = vld [vmem:[%s572 + $0x2c] sm:$0x1]
        %v587 = vld [vmem:[%s572 + $0x34] sm:$0x1]
        %v588 = vld [vmem:[%s572 + $0x3c] sm:$0x1]
        %v589 = vld [vmem:[%s572] sm:$0xe]
        %v590 = vld [vmem:[%s572 + $0x8] sm:$0xe]
        %v591 = vld [vmem:[%s572 + $0x10] sm:$0xe]
        %v592 = vld [vmem:[%s572 + $0x18] sm:$0xe]
        %v593 = vld [vmem:[%s572 + $0x20] sm:$0xe]
        %v594 = vld [vmem:[%s572 + $0x28] sm:$0xe]
        %v595 = vld [vmem:[%s572 + $0x30] sm:$0xe]
        %v596 = vld [vmem:[%s572 + $0x38] sm:$0xe]
        %v613 = vunpack.c.l.b16 %v524
        %v614 = vunpack.c.l.b16 %v532
        %v615 = vunpack.c.l.b16 %v525
        %v616 = vunpack.c.l.b16 %v533
        %v617 = vunpack.c.l.b16 %v526
        %v618 = vunpack.c.l.b16 %v534
        %v619 = vunpack.c.l.b16 %v527
        %v620 = vunpack.c.l.b16 %v535
        %v621 = vunpack.c.l.b16 %v528
        %v622 = vunpack.c.l.b16 %v536
        %v623 = vunpack.c.l.b16 %v529
        %v624 = vunpack.c.l.b16 %v537
        %v625 = vunpack.c.l.b16 %v530
        %v626 = vunpack.c.l.b16 %v538
        %v627 = vunpack.c.l.b16 %v531
        %v628 = vunpack.c.l.b16 %v539
        %v629 = vpack.c.b16 %v614, %v613
        %v630 = vpack.c.b16 %v616, %v615
        %v631 = vpack.c.b16 %v618, %v617
        %v632 = vpack.c.b16 %v620, %v619
        %v633 = vpack.c.b16 %v622, %v621
        %v634 = vpack.c.b16 %v624, %v623
        %v635 = vpack.c.b16 %v626, %v625
        %v636 = vpack.c.b16 %v628, %v627
        %v638 = vshrl.u32 %v629, 16
        %v640 = vshll.u32 %v629, 16
        %v642 = vrot.slane %v640, 1
        %v643 = vor.u32 %v638, %v642
        %v645 = vshrl.u32 %v630, 16
        %v647 = vshll.u32 %v630, 16
        %v649 = vrot.slane %v647, 1
        %v650 = vor.u32 %v645, %v649
        %v652 = vshrl.u32 %v631, 16
        %v654 = vshll.u32 %v631, 16
        %v656 = vrot.slane %v654, 1
        %v657 = vor.u32 %v652, %v656
        %v659 = vshrl.u32 %v632, 16
        %v661 = vshll.u32 %v632, 16
        %v663 = vrot.slane %v661, 1
        %v664 = vor.u32 %v659, %v663
        %v666 = vshrl.u32 %v633, 16
        %v668 = vshll.u32 %v633, 16
        %v670 = vrot.slane %v668, 1
        %v671 = vor.u32 %v666, %v670
        %v673 = vshrl.u32 %v634, 16
        %v675 = vshll.u32 %v634, 16
        %v677 = vrot.slane %v675, 1
        %v678 = vor.u32 %v673, %v677
        %v680 = vshrl.u32 %v635, 16
        %v682 = vshll.u32 %v635, 16
        %v684 = vrot.slane %v682, 1
        %v685 = vor.u32 %v680, %v684
        %v687 = vshrl.u32 %v636, 16
        %v689 = vshll.u32 %v636, 16
        %v691 = vrot.slane %v689, 1
        %v692 = vor.u32 %v687, %v691
        %693 = vrot.lane.b32.xlu0 %v643, 4
        %v694 = vpop.permute.xlu0 %693
        %695 = vrot.lane.b32.xlu0 %v650, 4
        %v696 = vpop.permute.xlu0 %695
        %697 = vrot.lane.b32.xlu0 %v657, 4
        %v698 = vpop.permute.xlu0 %697
        %699 = vrot.lane.b32.xlu0 %v664, 4
        %v700 = vpop.permute.xlu0 %699
        %701 = vrot.lane.b32.xlu0 %v671, 4
        %v702 = vpop.permute.xlu0 %701
        %703 = vrot.lane.b32.xlu0 %v678, 4
        %v704 = vpop.permute.xlu0 %703
        %705 = vrot.lane.b32.xlu0 %v685, 4
        %v706 = vpop.permute.xlu0 %705
        %707 = vrot.lane.b32.xlu0 %v692, 4
        %v708 = vpop.permute.xlu0 %707
        %v717 = vunpack.c.l.b16 %v540
        %v718 = vunpack.c.l.b16 %v541
        %v719 = vunpack.c.l.b16 %v542
        %v720 = vunpack.c.l.b16 %v543
        %v721 = vunpack.c.l.b16 %v544
        %v722 = vunpack.c.l.b16 %v545
        %v723 = vunpack.c.l.b16 %v546
        %v724 = vunpack.c.l.b16 %v547
        %v725 = vpack.c.b16 %v614, %v717
        %v726 = vpack.c.b16 %v616, %v718
        %v727 = vpack.c.b16 %v618, %v719
        %v728 = vpack.c.b16 %v620, %v720
        %v729 = vpack.c.b16 %v622, %v721
        %v730 = vpack.c.b16 %v624, %v722
        %v731 = vpack.c.b16 %v626, %v723
        %v732 = vpack.c.b16 %v628, %v724
        %v733 = vrot.slane %v725, 1
        %v734 = vrot.slane %v726, 1
        %v735 = vrot.slane %v727, 1
        %v736 = vrot.slane %v728, 1
        %v737 = vrot.slane %v729, 1
        %v738 = vrot.slane %v730, 1
        %v739 = vrot.slane %v731, 1
        %v740 = vrot.slane %v732, 1
        %741 = vrot.lane.b32.xlu0 %v733, 8
        %v742 = vpop.permute.xlu0 %741
        %743 = vrot.lane.b32.xlu0 %v734, 8
        %v744 = vpop.permute.xlu0 %743
        %745 = vrot.lane.b32.xlu0 %v735, 8
        %v746 = vpop.permute.xlu0 %745
        %747 = vrot.lane.b32.xlu0 %v736, 8
        %v748 = vpop.permute.xlu0 %747
        %749 = vrot.lane.b32.xlu0 %v737, 8
        %v750 = vpop.permute.xlu0 %749
        %751 = vrot.lane.b32.xlu0 %v738, 8
        %v752 = vpop.permute.xlu0 %751
        %753 = vrot.lane.b32.xlu0 %v739, 8
        %v754 = vpop.permute.xlu0 %753
        %755 = vrot.lane.b32.xlu0 %v740, 8
        %v756 = vpop.permute.xlu0 %755
        %v765 = vunpack.c.l.b16 %v548
        %v766 = vunpack.c.l.b16 %v549
        %v767 = vunpack.c.l.b16 %v550
        %v768 = vunpack.c.l.b16 %v551
        %v769 = vunpack.c.l.b16 %v552
        %v770 = vunpack.c.l.b16 %v553
        %v771 = vunpack.c.l.b16 %v554
        %v772 = vunpack.c.l.b16 %v555
        %v773 = vpack.c.b16 %v765, %v765
        %v774 = vpack.c.b16 %v766, %v766
        %v775 = vpack.c.b16 %v767, %v767
        %v776 = vpack.c.b16 %v768, %v768
        %v777 = vpack.c.b16 %v769, %v769
        %v778 = vpack.c.b16 %v770, %v770
        %v779 = vpack.c.b16 %v771, %v771
        %v780 = vpack.c.b16 %v772, %v772
        %781 = vrot.lane.b32.xlu0 %v773, 12
        %v782 = vpop.permute.xlu0 %781
        %783 = vrot.lane.b32.xlu0 %v774, 12
        %v784 = vpop.permute.xlu0 %783
        %785 = vrot.lane.b32.xlu0 %v775, 12
        %v786 = vpop.permute.xlu0 %785
        %787 = vrot.lane.b32.xlu0 %v776, 12
        %v788 = vpop.permute.xlu0 %787
        %789 = vrot.lane.b32.xlu0 %v777, 12
        %v790 = vpop.permute.xlu0 %789
        %791 = vrot.lane.b32.xlu0 %v778, 12
        %v792 = vpop.permute.xlu0 %791
        %793 = vrot.lane.b32.xlu0 %v779, 12
        %v794 = vpop.permute.xlu0 %793
        %795 = vrot.lane.b32.xlu0 %v780, 12
        %v796 = vpop.permute.xlu0 %795
        %v805 = vunpack.c.l.b16 %v556
        %v806 = vunpack.c.l.b16 %v557
        %v807 = vunpack.c.l.b16 %v558
        %v808 = vunpack.c.l.b16 %v559
        %v809 = vunpack.c.l.b16 %v560
        %v810 = vunpack.c.l.b16 %v561
        %v811 = vunpack.c.l.b16 %v562
        %v812 = vunpack.c.l.b16 %v563
        %v813 = vpack.c.b16 %v805, %v765
        %v814 = vpack.c.b16 %v806, %v766
        %v815 = vpack.c.b16 %v807, %v767
        %v816 = vpack.c.b16 %v808, %v768
        %v817 = vpack.c.b16 %v809, %v769
        %v818 = vpack.c.b16 %v810, %v770
        %v819 = vpack.c.b16 %v811, %v771
        %v820 = vpack.c.b16 %v812, %v772
        %v822 = vshrl.u32 %v813, 16
        %v824 = vshll.u32 %v813, 16
        %v826 = vrot.slane %v824, 1
        %v827 = vor.u32 %v822, %v826
        %v829 = vshrl.u32 %v814, 16
        %v831 = vshll.u32 %v814, 16
        %v833 = vrot.slane %v831, 1
        %v834 = vor.u32 %v829, %v833
        %v836 = vshrl.u32 %v815, 16
        %v838 = vshll.u32 %v815, 16
        %v840 = vrot.slane %v838, 1
        %v841 = vor.u32 %v836, %v840
        %v843 = vshrl.u32 %v816, 16
        %v845 = vshll.u32 %v816, 16
        %v847 = vrot.slane %v845, 1
        %v848 = vor.u32 %v843, %v847
        %v850 = vshrl.u32 %v817, 16
        %v852 = vshll.u32 %v817, 16
        %v854 = vrot.slane %v852, 1
        %v855 = vor.u32 %v850, %v854
        %v857 = vshrl.u32 %v818, 16
        %v859 = vshll.u32 %v818, 16
        %v861 = vrot.slane %v859, 1
        %v862 = vor.u32 %v857, %v861
        %v864 = vshrl.u32 %v819, 16
        %v866 = vshll.u32 %v819, 16
        %v868 = vrot.slane %v866, 1
        %v869 = vor.u32 %v864, %v868
        %v871 = vshrl.u32 %v820, 16
        %v873 = vshll.u32 %v820, 16
        %v875 = vrot.slane %v873, 1
        %v876 = vor.u32 %v871, %v875
        %877 = vrot.lane.b32.xlu0 %v827, 16
        %v878 = vpop.permute.xlu0 %877
        %879 = vrot.lane.b32.xlu0 %v834, 16
        %v880 = vpop.permute.xlu0 %879
        %881 = vrot.lane.b32.xlu0 %v841, 16
        %v882 = vpop.permute.xlu0 %881
        %883 = vrot.lane.b32.xlu0 %v848, 16
        %v884 = vpop.permute.xlu0 %883
        %885 = vrot.lane.b32.xlu0 %v855, 16
        %v886 = vpop.permute.xlu0 %885
        %887 = vrot.lane.b32.xlu0 %v862, 16
        %v888 = vpop.permute.xlu0 %887
        %889 = vrot.lane.b32.xlu0 %v869, 16
        %v890 = vpop.permute.xlu0 %889
        %891 = vrot.lane.b32.xlu0 %v876, 16
        %v892 = vpop.permute.xlu0 %891
        %v901 = vunpack.c.l.b16 %v564
        %v902 = vunpack.c.l.b16 %v565
        %v903 = vunpack.c.l.b16 %v566
        %v904 = vunpack.c.l.b16 %v567
        %v905 = vunpack.c.l.b16 %v568
        %v906 = vunpack.c.l.b16 %v569
        %v907 = vunpack.c.l.b16 %v570
        %v908 = vunpack.c.l.b16 %v571
        %v909 = vpack.c.b16 %v805, %v901
        %v910 = vpack.c.b16 %v806, %v902
        %v911 = vpack.c.b16 %v807, %v903
        %v912 = vpack.c.b16 %v808, %v904
        %v913 = vpack.c.b16 %v809, %v905
        %v914 = vpack.c.b16 %v810, %v906
        %v915 = vpack.c.b16 %v811, %v907
        %v916 = vpack.c.b16 %v812, %v908
        %v917 = vrot.slane %v909, 1
        %v918 = vrot.slane %v910, 1
        %v919 = vrot.slane %v911, 1
        %v920 = vrot.slane %v912, 1
        %v921 = vrot.slane %v913, 1
        %v922 = vrot.slane %v914, 1
        %v923 = vrot.slane %v915, 1
        %v924 = vrot.slane %v916, 1
        %925 = vrot.lane.b32.xlu0 %v917, 20
        %v926 = vpop.permute.xlu0 %925
        %927 = vrot.lane.b32.xlu0 %v918, 20
        %v928 = vpop.permute.xlu0 %927
        %929 = vrot.lane.b32.xlu0 %v919, 20
        %v930 = vpop.permute.xlu0 %929
        %931 = vrot.lane.b32.xlu0 %v920, 20
        %v932 = vpop.permute.xlu0 %931
        %933 = vrot.lane.b32.xlu0 %v921, 20
        %v934 = vpop.permute.xlu0 %933
        %935 = vrot.lane.b32.xlu0 %v922, 20
        %v936 = vpop.permute.xlu0 %935
        %937 = vrot.lane.b32.xlu0 %v923, 20
        %v938 = vpop.permute.xlu0 %937
        %939 = vrot.lane.b32.xlu0 %v924, 20
        %v940 = vpop.permute.xlu0 %939
        %v949 = vunpack.c.l.b16 %v573
        %v950 = vunpack.c.l.b16 %v574
        %v951 = vunpack.c.l.b16 %v575
        %v952 = vunpack.c.l.b16 %v576
        %v953 = vunpack.c.l.b16 %v577
        %v954 = vunpack.c.l.b16 %v578
        %v955 = vunpack.c.l.b16 %v579
        %v956 = vunpack.c.l.b16 %v580
        %v957 = vpack.c.b16 %v949, %v949
        %v958 = vpack.c.b16 %v950, %v950
        %v959 = vpack.c.b16 %v951, %v951
        %v960 = vpack.c.b16 %v952, %v952
        %v961 = vpack.c.b16 %v953, %v953
        %v962 = vpack.c.b16 %v954, %v954
        %v963 = vpack.c.b16 %v955, %v955
        %v964 = vpack.c.b16 %v956, %v956
        %965 = vrot.lane.b32.xlu0 %v957, 24
        %v966 = vpop.permute.xlu0 %965
        %967 = vrot.lane.b32.xlu0 %v958, 24
        %v968 = vpop.permute.xlu0 %967
        %969 = vrot.lane.b32.xlu0 %v959, 24
        %v970 = vpop.permute.xlu0 %969
        %971 = vrot.lane.b32.xlu0 %v960, 24
        %v972 = vpop.permute.xlu0 %971
        %973 = vrot.lane.b32.xlu0 %v961, 24
        %v974 = vpop.permute.xlu0 %973
        %975 = vrot.lane.b32.xlu0 %v962, 24
        %v976 = vpop.permute.xlu0 %975
        %977 = vrot.lane.b32.xlu0 %v963, 24
        %v978 = vpop.permute.xlu0 %977
        %979 = vrot.lane.b32.xlu0 %v964, 24
        %v980 = vpop.permute.xlu0 %979
        %v989 = vunpack.c.l.b16 %v581
        %v990 = vunpack.c.l.b16 %v582
        %v991 = vunpack.c.l.b16 %v583
        %v992 = vunpack.c.l.b16 %v584
        %v993 = vunpack.c.l.b16 %v585
        %v994 = vunpack.c.l.b16 %v586
        %v995 = vunpack.c.l.b16 %v587
        %v996 = vunpack.c.l.b16 %v588
        %v997 = vpack.c.b16 %v989, %v949
        %v998 = vpack.c.b16 %v990, %v950
        %v999 = vpack.c.b16 %v991, %v951
        %v1000 = vpack.c.b16 %v992, %v952
        %v1001 = vpack.c.b16 %v993, %v953
        %v1002 = vpack.c.b16 %v994, %v954
        %v1003 = vpack.c.b16 %v995, %v955
        %v1004 = vpack.c.b16 %v996, %v956
        %v1006 = vshrl.u32 %v997, 16
        %v1008 = vshll.u32 %v997, 16
        %v1010 = vrot.slane %v1008, 1
        %v1011 = vor.u32 %v1006, %v1010
        %v1013 = vshrl.u32 %v998, 16
        %v1015 = vshll.u32 %v998, 16
        %v1017 = vrot.slane %v1015, 1
        %v1018 = vor.u32 %v1013, %v1017
        %v1020 = vshrl.u32 %v999, 16
        %v1022 = vshll.u32 %v999, 16
        %v1024 = vrot.slane %v1022, 1
        %v1025 = vor.u32 %v1020, %v1024
        %v1027 = vshrl.u32 %v1000, 16
        %v1029 = vshll.u32 %v1000, 16
        %v1031 = vrot.slane %v1029, 1
        %v1032 = vor.u32 %v1027, %v1031
        %v1034 = vshrl.u32 %v1001, 16
        %v1036 = vshll.u32 %v1001, 16
        %v1038 = vrot.slane %v1036, 1
        %v1039 = vor.u32 %v1034, %v1038
        %v1041 = vshrl.u32 %v1002, 16
        %v1043 = vshll.u32 %v1002, 16
        %v1045 = vrot.slane %v1043, 1
        %v1046 = vor.u32 %v1041, %v1045
        %v1048 = vshrl.u32 %v1003, 16
        %v1050 = vshll.u32 %v1003, 16
        %v1052 = vrot.slane %v1050, 1
        %v1053 = vor.u32 %v1048, %v1052
        %v1055 = vshrl.u32 %v1004, 16
        %v1057 = vshll.u32 %v1004, 16
        %v1059 = vrot.slane %v1057, 1
        %v1060 = vor.u32 %v1055, %v1059
        %1061 = vrot.lane.b32.xlu0 %v1011, 28
        %v1062 = vpop.permute.xlu0 %1061
        %1063 = vrot.lane.b32.xlu0 %v1018, 28
        %v1064 = vpop.permute.xlu0 %1063
        %1065 = vrot.lane.b32.xlu0 %v1025, 28
        %v1066 = vpop.permute.xlu0 %1065
        %1067 = vrot.lane.b32.xlu0 %v1032, 28
        %v1068 = vpop.permute.xlu0 %1067
        %1069 = vrot.lane.b32.xlu0 %v1039, 28
        %v1070 = vpop.permute.xlu0 %1069
        %1071 = vrot.lane.b32.xlu0 %v1046, 28
        %v1072 = vpop.permute.xlu0 %1071
        %1073 = vrot.lane.b32.xlu0 %v1053, 28
        %v1074 = vpop.permute.xlu0 %1073
        %1075 = vrot.lane.b32.xlu0 %v1060, 28
        %v1076 = vpop.permute.xlu0 %1075
        %v1085 = vunpack.c.l.b16 %v589
        %v1086 = vunpack.c.l.b16 %v590
        %v1087 = vunpack.c.l.b16 %v591
        %v1088 = vunpack.c.l.b16 %v592
        %v1089 = vunpack.c.l.b16 %v593
        %v1090 = vunpack.c.l.b16 %v594
        %v1091 = vunpack.c.l.b16 %v595
        %v1092 = vunpack.c.l.b16 %v596
        %v1093 = vpack.c.b16 %v989, %v1085
        %v1094 = vpack.c.b16 %v990, %v1086
        %v1095 = vpack.c.b16 %v991, %v1087
        %v1096 = vpack.c.b16 %v992, %v1088
        %v1097 = vpack.c.b16 %v993, %v1089
        %v1098 = vpack.c.b16 %v994, %v1090
        %v1099 = vpack.c.b16 %v995, %v1091
        %v1100 = vpack.c.b16 %v996, %v1092
        %v1101 = vrot.slane %v1093, 1
        %v1102 = vrot.slane %v1094, 1
        %v1103 = vrot.slane %v1095, 1
        %v1104 = vrot.slane %v1096, 1
        %v1105 = vrot.slane %v1097, 1
        %v1106 = vrot.slane %v1098, 1
        %v1107 = vrot.slane %v1099, 1
        %v1108 = vrot.slane %v1100, 1
        %1109 = vrot.lane.b32.xlu0 %v1101, 32
        %v1110 = vpop.permute.xlu0 %1109
        %1111 = vrot.lane.b32.xlu0 %v1102, 32
        %v1112 = vpop.permute.xlu0 %1111
        %1113 = vrot.lane.b32.xlu0 %v1103, 32
        %v1114 = vpop.permute.xlu0 %1113
        %1115 = vrot.lane.b32.xlu0 %v1104, 32
        %v1116 = vpop.permute.xlu0 %1115
        %1117 = vrot.lane.b32.xlu0 %v1105, 32
        %v1118 = vpop.permute.xlu0 %1117
        %1119 = vrot.lane.b32.xlu0 %v1106, 32
        %v1120 = vpop.permute.xlu0 %1119
        %1121 = vrot.lane.b32.xlu0 %v1107, 32
        %v1122 = vpop.permute.xlu0 %1121
        %1123 = vrot.lane.b32.xlu0 %v1108, 32
        %v1124 = vpop.permute.xlu0 %1123
        %vm1125 = vcmask 31744
        %v1128 = vsel %vm1125, %v524, %v694
        %v1131 = vsel %vm1125, %v525, %v696
        %v1134 = vsel %vm1125, %v526, %v698
        %v1137 = vsel %vm1125, %v527, %v700
        %v1140 = vsel %vm1125, %v528, %v702
        %v1143 = vsel %vm1125, %v529, %v704
        %v1146 = vsel %vm1125, %v530, %v706
        %v1149 = vsel %vm1125, %v531, %v708
        %vm1150 = vcmask 64512
        %v1152 = vsel %vm1150, %v1128, %v742
        %v1154 = vsel %vm1150, %v1131, %v744
        %v1156 = vsel %vm1150, %v1134, %v746
        %v1158 = vsel %vm1150, %v1137, %v748
        %v1160 = vsel %vm1150, %v1140, %v750
        %v1162 = vsel %vm1150, %v1143, %v752
        %v1164 = vsel %vm1150, %v1146, %v754
        %v1166 = vsel %vm1150, %v1149, %v756
        %vm1167 = vcmask 97280
        %v1169 = vsel %vm1167, %v1152, %v782
        %v1171 = vsel %vm1167, %v1154, %v784
        %v1173 = vsel %vm1167, %v1156, %v786
        %v1175 = vsel %vm1167, %v1158, %v788
        %v1177 = vsel %vm1167, %v1160, %v790
        %v1179 = vsel %vm1167, %v1162, %v792
        %v1181 = vsel %vm1167, %v1164, %v794
        %v1183 = vsel %vm1167, %v1166, %v796
        %vm1184 = vcmask 130048
        %v1186 = vsel %vm1184, %v1169, %v878
        %v1188 = vsel %vm1184, %v1171, %v880
        %v1190 = vsel %vm1184, %v1173, %v882
        %v1192 = vsel %vm1184, %v1175, %v884
        %v1194 = vsel %vm1184, %v1177, %v886
        %v1196 = vsel %vm1184, %v1179, %v888
        %v1198 = vsel %vm1184, %v1181, %v890
        %v1200 = vsel %vm1184, %v1183, %v892
        %vm1201 = vcmask 162816
        %v1203 = vsel %vm1201, %v1186, %v926
        %v1205 = vsel %vm1201, %v1188, %v928
        %v1207 = vsel %vm1201, %v1190, %v930
        %v1209 = vsel %vm1201, %v1192, %v932
        %v1211 = vsel %vm1201, %v1194, %v934
        %v1213 = vsel %vm1201, %v1196, %v936
        %v1215 = vsel %vm1201, %v1198, %v938
        %v1217 = vsel %vm1201, %v1200, %v940
        %vm1218 = vcmask 195584
        %v1220 = vsel %vm1218, %v1203, %v966
        %v1222 = vsel %vm1218, %v1205, %v968
        %v1224 = vsel %vm1218, %v1207, %v970
        %v1226 = vsel %vm1218, %v1209, %v972
        %v1228 = vsel %vm1218, %v1211, %v974
        %v1230 = vsel %vm1218, %v1213, %v976
        %v1232 = vsel %vm1218, %v1215, %v978
        %v1234 = vsel %vm1218, %v1217, %v980
        %vm1235 = vcmask 228352
        %v1237 = vsel %vm1235, %v1220, %v1062
        %v1239 = vsel %vm1235, %v1222, %v1064
        %v1241 = vsel %vm1235, %v1224, %v1066
        %v1243 = vsel %vm1235, %v1226, %v1068
        %v1245 = vsel %vm1235, %v1228, %v1070
        %v1247 = vsel %vm1235, %v1230, %v1072
        %v1249 = vsel %vm1235, %v1232, %v1074
        %v1251 = vsel %vm1235, %v1234, %v1076
        %vm1252 = vcmask 261120
        %v1254 = vsel %vm1252, %v1237, %v1110
        %v1256 = vsel %vm1252, %v1239, %v1112
        %v1258 = vsel %vm1252, %v1241, %v1114
        %v1260 = vsel %vm1252, %v1243, %v1116
        %v1262 = vsel %vm1252, %v1245, %v1118
        %v1264 = vsel %vm1252, %v1247, %v1120
        %v1266 = vsel %vm1252, %v1249, %v1122
        %v1268 = vsel %vm1252, %v1251, %v1124
        %v1269 = vld [vmem:[%s1] sm:$0xf]
        %v1270 = vld [vmem:[%s1 + $0x4] sm:$0xf]
        %v1271 = vld [vmem:[%s1 + $0x8] sm:$0xf]
        %v1272 = vld [vmem:[%s1 + $0xc] sm:$0xf]
        %v1273 = vld [vmem:[%s1 + $0x10] sm:$0x3]
        %v1282 = vunpack.c.l.b16 %v1254
        %v1283 = vunpack.c.l.b16 %v1256
        %v1284 = vunpack.c.l.b16 %v1258
        %v1285 = vunpack.c.l.b16 %v1260
        %v1286 = vunpack.c.l.b16 %v1262
        %v1287 = vunpack.c.l.b16 %v1264
        %v1288 = vunpack.c.l.b16 %v1266
        %v1289 = vunpack.c.l.b16 %v1268
        %v1290 = vpack.c.b16 %v1283, %v1282
        %v1291 = vpack.c.b16 %v1285, %v1284
        %v1292 = vpack.c.b16 %v1287, %v1286
        %v1293 = vpack.c.b16 %v1289, %v1288
        %v1299 = vunpack.c.l.b16 %v1269
        %v1300 = vunpack.c.l.b16 %v1270
        %v1301 = vunpack.c.l.b16 %v1271
        %v1302 = vunpack.c.l.b16 %v1272
        %v1303 = vunpack.c.l.b16 %v1273
        %v1304 = vpack.c.b16 %v1300, %v1299
        %v1305 = vpack.c.b16 %v1302, %v1301
        %v1306 = vpack.c.b16 %v1303, %v1303
        %vm1309 = vcmask 293888
        %v1311 = vsel %vm1309, %v1290, 0
        %v1314 = vsel %vm1309, %v1291, 0
        %v1317 = vsel %vm1309, %v1292, 0
        %v1320 = vsel %vm1309, %v1293, 0
        %vm1322 = vcmask 1041408
        %v1324 = vsel %vm1322, %v1306, 0
        %1326 = vmatprep.subr.bf16.mxu0 0
        %1327 = vmatpush1.bf16.msra.mxu0 %v1304
        %1328 = vmatprep.subr.bf16.mxu0 0
        %1329 = vmatpush1.bf16.msra.mxu0 %v1305
        %1330 = vmatprep.subr.bf16.mxu0 0
        %1331 = vmatpush1.bf16.msra.mxu0 %v1324
        %1332 = vmatprep.subr.bf16.mxu0 0
        %1333 = vmatpush1.bf16.msra.mxu0 0
        %1334 = vmatprep.subr.bf16.mxu0 0
        %1335 = vmatpush1.bf16.msra.mxu0 0
        %1336 = vmatprep.subr.bf16.mxu0 0
        %1337 = vmatpush1.bf16.msra.mxu0 0
        %1338 = vmatprep.subr.bf16.mxu0 0
        %1339 = vmatpush1.bf16.msra.mxu0 0
        %1340 = vmatprep.subr.bf16.mxu0 0
        %1341 = vmatpush1.bf16.msra.mxu0 0
        %1342 = vmatprep.subr.bf16.mxu0 0
        %1343 = vmatpush1.bf16.msra.mxu0 0
        %1344 = vmatprep.subr.bf16.mxu0 0
        %1345 = vmatpush1.bf16.msra.mxu0 0
        %1346 = vmatprep.subr.bf16.mxu0 0
        %1347 = vmatpush1.bf16.msra.mxu0 0
        %1348 = vmatprep.subr.bf16.mxu0 0
        %1349 = vmatpush1.bf16.msra.mxu0 0
        %1350 = vmatprep.subr.bf16.mxu0 0
        %1351 = vmatpush1.bf16.msra.mxu0 0
        %1352 = vmatprep.subr.bf16.mxu0 0
        %1353 = vmatpush1.bf16.msra.mxu0 0
        %1354 = vmatprep.subr.bf16.mxu0 0
        %1355 = vmatpush1.bf16.msra.mxu0 0
        %1356 = vmatprep.subr.bf16.mxu0 0
        %1357 = vmatpush1.bf16.msra.mxu0 0
        %1358 = vmatprep.mubr.bf16.mxu0 0
        %1359 = vmatmul.mubr.bf16.gmra.mrb[0].mxu0 %v1311
        %v1360 = vpop.f32.mrb[0].mxu0
        %v1361 = vadd.f32 0.0, %v1360
        %v1362 = vpop.f32.mrb[0].mxu0
        %v1363 = vpop.f32.mrb[0].mxu0
        %v1364 = vadd.f32 0.0, %v1363
        %v1365 = vpop.f32.mrb[0].mxu0
        %1366 = vmatprep.mubr.bf16.mxu0 0
        %1367 = vmatmul.mubr.bf16.gmra.mrb[0].mxu0 %v1314
        %v1368 = vpop.f32.mrb[0].mxu0
        %v1369 = vadd.f32 0.0, %v1368
        %v1370 = vpop.f32.mrb[0].mxu0
        %v1371 = vpop.f32.mrb[0].mxu0
        %v1372 = vadd.f32 0.0, %v1371
        %v1373 = vpop.f32.mrb[0].mxu0
        %1374 = vmatprep.mubr.bf16.mxu0 0
        %1375 = vmatmul.mubr.bf16.gmra.mrb[0].mxu0 %v1317
        %v1376 = vpop.f32.mrb[0].mxu0
        %v1377 = vadd.f32 0.0, %v1376
        %v1378 = vpop.f32.mrb[0].mxu0
        %v1379 = vpop.f32.mrb[0].mxu0
        %v1380 = vadd.f32 0.0, %v1379
        %v1381 = vpop.f32.mrb[0].mxu0
        %1382 = vmatprep.mubr.bf16.mxu0 0
        %1383 = vmatmul.mubr.bf16.gmra.mrb[0].mxu0 %v1320
        %v1384 = vpop.f32.mrb[0].mxu0
        %v1385 = vadd.f32 0.0, %v1384
        %v1386 = vpop.f32.mrb[0].mxu0
        %v1387 = vpop.f32.mrb[0].mxu0
        %v1388 = vadd.f32 0.0, %v1387
        %v1389 = vpop.f32.mrb[0].mxu0
        %1390 = vdwg.mxu0
        %1391 = vst.msk [vmem:[%s192] sm:$0xff] %vm1150, %v1361
        %1392 = vst.msk [vmem:[%s192 + $0x8] sm:$0xff] %vm1150, %v1364
        %1393 = vst.msk [vmem:[%s192 + $0x10] sm:$0xff] %vm1150, %v1369
        %1394 = vst.msk [vmem:[%s192 + $0x18] sm:$0xff] %vm1150, %v1372
        %1395 = vst.msk [vmem:[%s192 + $0x20] sm:$0xff] %vm1150, %v1377
        %1396 = vst.msk [vmem:[%s192 + $0x28] sm:$0xff] %vm1150, %v1380
        %1397 = vst.msk [vmem:[%s192 + $0x30] sm:$0xff] %vm1150, %v1385
        %1398 = vst.msk [vmem:[%s192 + $0x38] sm:$0xff] %vm1150, %v1388
        %v1399 = vsel %vm1150, %v1361, 0.0
        %v1400 = vsel %vm1150, %v1364, 0.0
        %v1401 = vadd.f32 %v1399, %v1400
        %v1402 = vsel %vm1150, %v1369, 0.0
        %v1403 = vadd.f32 %v1401, %v1402
        %v1404 = vsel %vm1150, %v1372, 0.0
        %v1405 = vadd.f32 %v1403, %v1404
        %v1406 = vsel %vm1150, %v1377, 0.0
        %v1407 = vadd.f32 %v1405, %v1406
        %v1408 = vsel %vm1150, %v1380, 0.0
        %v1409 = vadd.f32 %v1407, %v1408
        %v1410 = vsel %vm1150, %v1385, 0.0
        %v1411 = vadd.f32 %v1409, %v1410
        %v1412 = vsel %vm1150, %v1388, 0.0
        %v1413 = vadd.f32 %v1411, %v1412
        %v1414 = vrot.slane %v1413, 4
        %v1415 = vadd.f32 %v1413, %v1414
        %v1416 = vrot.slane %v1415, 2
        %v1417 = vadd.f32 %v1415, %v1416
        %v1418 = vrot.slane %v1417, 1
        %v1419 = vadd.f32 %v1417, %v1418
        %v1420 = vmul.f32 %v1361, %v1361
        %v1421 = vmul.f32 %v1364, %v1364
        %v1422 = vmul.f32 %v1369, %v1369
        %v1423 = vmul.f32 %v1372, %v1372
        %v1424 = vmul.f32 %v1377, %v1377
        %v1425 = vmul.f32 %v1380, %v1380
        %v1426 = vmul.f32 %v1385, %v1385
        %v1427 = vmul.f32 %v1388, %v1388
        %v1428 = vsel %vm1150, %v1420, 0.0
        %v1429 = vsel %vm1150, %v1421, 0.0
        %v1430 = vadd.f32 %v1428, %v1429
        %v1431 = vsel %vm1150, %v1422, 0.0
        %v1432 = vadd.f32 %v1430, %v1431
        %v1433 = vsel %vm1150, %v1423, 0.0
        %v1434 = vadd.f32 %v1432, %v1433
        %v1435 = vsel %vm1150, %v1424, 0.0
        %v1436 = vadd.f32 %v1434, %v1435
        %v1437 = vsel %vm1150, %v1425, 0.0
        %v1438 = vadd.f32 %v1436, %v1437
        %v1439 = vsel %vm1150, %v1426, 0.0
        %v1440 = vadd.f32 %v1438, %v1439
        %v1441 = vsel %vm1150, %v1427, 0.0
        %v1442 = vadd.f32 %v1440, %v1441
        %v1443 = vrot.slane %v1442, 4
        %v1444 = vadd.f32 %v1442, %v1443
        %v1445 = vrot.slane %v1444, 2
        %v1446 = vadd.f32 %v1444, %v1445
        %v1447 = vrot.slane %v1446, 1
        %v1448 = vadd.f32 %v1446, %v1447
        %vm1449 = vcmask 1040384
        %v1450 = vsel %vm1449, %v1419, %v1448
        %vm1451 = vcmask 58368
        %1452 = vst.msk [vmem:[%s199] sm:$0x3] %vm1451, %v1450
        %s1453 = sand.u32 %s79, 1
        %s1454 = scalar_lea.sflag [#allocation5], %s1453
        %s1455 = sand.u32 %s79, 1
        %s1456 = smul.addr %s1455, 64
        %s1457 = scalar_lea.vmem [#allocation6], %s1456
        %s1458 = sand.u32 %s105, 1
        %s1459 = scalar_lea.sflag [#allocation8], %s1458
        %s1460 = sand.u32 %s105, 1
        %s1461 = smul.addr %s1460, 2
        %s1462 = scalar_lea.vmem [#allocation7], %s1461
        // Predicated region
        $region33: #{tpu_custom_call.1} parent=27 // pred_check
          %p1463 = pneg %p89
        $region34: #{tpu_custom_call.1} parent=27 // pred_check_branch
          %1465 = sbr.rel (%p1463) target = $region36
        $region35: #{tpu_custom_call.1} parent=27 // pred_region
          %s1467 = ssub.s32 1024, 1024
          %1468 = vsyncadd %s1454, %s1467
          %s1469 = smul.addr %s24, 8
          %s1470 = smul.addr %s1469, 128
          %s1471 = scalar_lea.hbm %s2, %s1470
          %s1472 = sshll.u32 %s1457, 4
          %s1473 = int_to_ptr.vmem [resolvable:$true] %s1472
          %1478 = dma.vmem_to_hbm [thread:$0]  %s1473, 1024, %s1471, %s1454, 128, 128, 8
        $region36: #{tpu_custom_call.1} parent=27 // pred_fallthru
          _
        // Predicated region
        $region37: #{tpu_custom_call.1} parent=27 // pred_check
          %p1479 = pneg %p115
        $region38: #{tpu_custom_call.1} parent=27 // pred_check_branch
          %1481 = sbr.rel (%p1479) target = $region40
        $region39: #{tpu_custom_call.1} parent=27 // pred_region
          %s1483 = ssub.s32 32, 32
          %1484 = vsyncadd %s1459, %s1483
          %s1485 = smul.addr %s24, 32
          %s1486 = scalar_lea.hbm %s3, %s1485
          %s1488 = sshll.u32 %s1462, 4
          %s1489 = int_to_ptr.vmem [resolvable:$true] %s1488
          %1491 = dma.vmem_to_hbm [thread:$0]  %s1489, 32, %s1486, %s1459
        $region40: #{tpu_custom_call.1} parent=27 // pred_fallthru
          _
      $region28: #{tpu_custom_call.1} parent=5 // pred_fallthru
        _
      %p1492 = scmp.le.s32.totalorder 2, %s19
      // Predicated region
      $region41: #{tpu_custom_call.1} parent=5 // pred_check
        %p1493 = pneg %p1492
      $region42: #{tpu_custom_call.1} parent=5 // pred_check_branch
        %1495 = sbr.rel (%p1493) target = $region44
      $region43: #{tpu_custom_call.1} parent=5 // pred_region
        %s1496 = ssub.s32 %s19, 2
        // Predicated region
        $region45: #{tpu_custom_call.1} parent=43 // pred_check
          %p1497 = pneg %p95
        $region46: #{tpu_custom_call.1} parent=43 // pred_check_branch
          %1499 = sbr.rel (%p1497) target = $region48
        $region47: #{tpu_custom_call.1} parent=43 // pred_region
          %s1500 = sand.u32 %s80, 1
          %s1501 = scalar_lea.sflag [#allocation5], %s1500
          %s1502 = sand.u32 %s80, 1
          %s1503 = smul.addr %s1502, 64
          %s1504 = scalar_lea.vmem [#allocation6], %s1503
          %1505 = dma.done %s1501, 1024
        $region48: #{tpu_custom_call.1} parent=43 // pred_fallthru
          _
        // Predicated region
        $region49: #{tpu_custom_call.1} parent=43 // pred_check
          %p1506 = pneg %p121
        $region50: #{tpu_custom_call.1} parent=43 // pred_check_branch
          %1508 = sbr.rel (%p1506) target = $region52
        $region51: #{tpu_custom_call.1} parent=43 // pred_region
          %s1509 = sand.u32 %s106, 1
          %s1510 = scalar_lea.sflag [#allocation8], %s1509
          %s1511 = sand.u32 %s106, 1
          %s1512 = smul.addr %s1511, 2
          %s1513 = scalar_lea.vmem [#allocation7], %s1512
          %1514 = dma.done %s1510, 32
        $region52: #{tpu_custom_call.1} parent=43 // pred_fallthru
          _
      $region44: #{tpu_custom_call.1} parent=5 // pred_fallthru
        _
    $region6: #{tpu_custom_call.1} parent=1 // loop_footer
      %s23 = sadd.s32 1, %s19
    $region7: #{tpu_custom_call.1} parent=1 // loop_footer_branch
      %18 = sbr.rel target = $region3
    $region8: #{tpu_custom_call.1} parent=1 // loop_exit
      _
    %1515 = vsyncpa [#allocation4], 1
    %s1516 = scalar_lea.sflag [#allocation4], 1
    %1517 = vsyncpa %s1516, 1
    %1518 = vsyncpa [#allocation5], 1
    %s1519 = scalar_lea.sflag [#allocation5], 1
    %1520 = vsyncpa %s1519, 1
    %1521 = vsyncpa [#allocation8], 1
    %s1522 = scalar_lea.sflag [#allocation8], 1
    %1523 = vsyncpa %s1522, 1

</llo_original>
